<compile_context>
chip_gen: v5e
topology: v5e:2x2
jax: 0.10.0
libtpu: 0.0.40
codegen_flags: <defaults>
</compile_context>

<pallas_src>
import functools

import jax
import jax.numpy as jnp
from jax import lax
from jax.experimental import pallas as pl
from jax.experimental.pallas import tpu as pltpu


# ----------------------------------------------------------------------------
# small helpers / one-time hardware detection
# ----------------------------------------------------------------------------
def _round_up(x, m):
    return (x + m - 1) // m * m


def _pick_divisor_tile(total, cap, quantum):
    """Largest multiple of `quantum` that divides `total` and is <= cap (total % quantum == 0)."""
    best = quantum
    t = quantum
    while t <= min(cap, total):
        if total % t == 0:
            best = t
        t += quantum
    return min(best, total)


def _pad_vec(v, c_target):
    return jnp.pad(v, (0, c_target - v.shape[0]))


def _detect_hw():
    try:
        kind = jax.devices()[0].device_kind.lower()
    except Exception:
        kind = ""
    is_v5 = "v5" in kind
    try:
        cap = pltpu.get_tpu_info().vmem_capacity_bytes
    except Exception:
        # v5e/v6e have 128 MiB VMEM, v7x has 64 MiB; be conservative if unknown.
        cap = 128 * 1024 * 1024 if ("v5" in kind or "v6" in kind) else 64 * 1024 * 1024
    limit = max(32 * 1024 * 1024, min(96 * 1024 * 1024, (3 * cap) // 4))
    return is_v5, int(limit)


_IS_V5, _VMEM_LIMIT = _detect_hw()


# ----------------------------------------------------------------------------
# Pallas kernel 1: tiled GEMM (conv-as-matmul) + fused per-channel BN statistics
# ----------------------------------------------------------------------------
def _gemm_bn_stats_kernel(a_ref, w_ref, o_ref, sum_ref, sq_ref, acc_ref):
    """(tm,tk)bf16 @ (tk,tn)bf16 accumulated in f32; epilogue emits per-channel partial BN stats."""
    k = pl.program_id(2)

    @pl.when(k == 0)
    def _():
        acc_ref[...] = jnp.zeros_like(acc_ref)

    acc_ref[...] += jnp.dot(a_ref[...], w_ref[...], preferred_element_type=jnp.float32)

    @pl.when(k == pl.num_programs(2) - 1)
    def _():
        acc = acc_ref[...]
        o_ref[...] = acc.astype(o_ref.dtype)
        # Per-(M-tile) partial statistics.  NOTE: exactness relies on the conv bias having been
        # dropped -> padded (all-zero) rows/K-columns contribute nothing, so the later division
        # by the *real* M is exact.  Do NOT reintroduce a pre-BN per-channel offset here.
        sum_ref[...] = jnp.sum(acc, axis=0, keepdims=True)[None]
        sq_ref[...] = jnp.sum(acc * acc, axis=0, keepdims=True)[None]


def conv_gemm_bn_stats(a, w, tm, *, out_dtype=jnp.bfloat16):
    """Tiled GEMM that also returns per-output-channel sum / sum-of-squares (training-mode BN)."""
    m_p, k_dim = a.shape
    k_dim2, c_p = w.shape
    assert k_dim == k_dim2 and m_p % tm == 0
    tk = _pick_divisor_tile(k_dim, 512, 128)
    tn = _pick_divisor_tile(c_p, 256 if _IS_V5 else 512, 128)
    mt, nt, kt = m_p // tm, c_p // tn, k_dim // tk

    a_spec = pl.BlockSpec((tm, tk), lambda m, n, k: (m, k))
    w_spec = pl.BlockSpec((tk, tn), lambda m, n, k: (k, n))
    if kt <= 2 and mt * nt > 1:
        # Short reduction loop: deepen input buffering so the epilogue/init cost is hidden.
        a_spec = pl.BlockSpec((tm, tk), lambda m, n, k: (m, k), pipeline_mode=pl.Buffered(3))
        w_spec = pl.BlockSpec((tk, tn), lambda m, n, k: (k, n), pipeline_mode=pl.Buffered(3))

    a_bytes = a.size * a.dtype.itemsize
    w_bytes = w.size * w.dtype.itemsize
    y_bytes = m_p * c_p * jnp.dtype(out_dtype).itemsize
    cost = pl.CostEstimate(
        flops=int(2 * m_p * k_dim * c_p),
        transcendentals=0,
        bytes_accessed=int(a_bytes * nt + w_bytes * mt + y_bytes + 2 * mt * c_p * 4),
    )

    y, s_part, q_part = pl.pallas_call(
        _gemm_bn_stats_kernel,
        out_shape=(
            jax.ShapeDtypeStruct((m_p, c_p), out_dtype),
            jax.ShapeDtypeStruct((mt, 1, c_p), jnp.float32),
            jax.ShapeDtypeStruct((mt, 1, c_p), jnp.float32),
        ),
        grid=(mt, nt, kt),
        in_specs=[a_spec, w_spec],
        out_specs=(
            pl.BlockSpec((tm, tn), lambda m, n, k: (m, n)),
            pl.BlockSpec((1, 1, tn), lambda m, n, k: (m, 0, n)),
            pl.BlockSpec((1, 1, tn), lambda m, n, k: (m, 0, n)),
        ),
        scratch_shapes=[pltpu.VMEM((tm, tn), jnp.float32)],
        compiler_params=pltpu.CompilerParams(
            dimension_semantics=("parallel", "parallel", "arbitrary"),
            vmem_limit_bytes=_VMEM_LIMIT,
        ),
        cost_estimate=cost,
    )(a, w)

    # Tiny cross-tile reduction of the partial stats (mt x C elements).
    s_tot = jnp.sum(s_part, axis=(0, 1))
    q_tot = jnp.sum(q_part, axis=(0, 1))
    return y, s_tot, q_tot


# ----------------------------------------------------------------------------
# Pallas kernel 2: BN normalize (+ fused skip-BN or plain residual) (+ ReLU)
# ----------------------------------------------------------------------------
def _make_bn_apply_kernel(relu, skip_mode, eps, m_real):
    inv_m = 1.0 / float(m_real)

    def scale_shift(s, q, g, b):
        mean = s * inv_m
        # E[x^2]-E[x]^2 in f32: fine at the current tolerance (documented correctness note).
        var = jnp.maximum(q * inv_m - mean * mean, 0.0)
        scale = g * lax.rsqrt(var + eps)
        shift = b - mean * scale
        return scale, shift

    def kernel(*refs):
        if skip_mode == "bn":
            (x_ref, s_ref, q_ref, g_ref, b_ref,
             r_ref, rs_ref, rq_ref, rg_ref, rb_ref, o_ref) = refs
        elif skip_mode == "plain":
            x_ref, s_ref, q_ref, g_ref, b_ref, r_ref, o_ref = refs
        else:
            x_ref, s_ref, q_ref, g_ref, b_ref, o_ref = refs

        scale, shift = scale_shift(s_ref[...], q_ref[...], g_ref[...], b_ref[...])
        y = x_ref[...].astype(jnp.float32) * scale + shift
        if skip_mode == "bn":
            rscale, rshift = scale_shift(rs_ref[...], rq_ref[...], rg_ref[...], rb_ref[...])
            y = y + r_ref[...].astype(jnp.float32) * rscale + rshift
        elif skip_mode == "plain":
            y = y + r_ref[...].astype(jnp.float32)
        if relu:
            y = jnp.maximum(y, 0.0)
        o_ref[...] = y.astype(o_ref.dtype)

    return kernel


def batchnorm_apply(x, stats, *, m_real, tm, relu, residual=None, residual_stats=None,
                    eps=1e-5, out_dtype=jnp.bfloat16):
    """Normalize + scale/shift (+ fused skip-BN / residual) (+ReLU) from precomputed sums."""
    m_p, c_p = x.shape
    assert m_p % tm == 0
    tn = _pick_divisor_tile(c_p, 512, 128)   # channel-tiled: keeps per-step VMEM small on v7x
    mt, ct = m_p // tm, c_p // tn

    skip_mode = "none" if residual is None else ("bn" if residual_stats is not None else "plain")
    kernel = _make_bn_apply_kernel(relu, skip_mode, eps, m_real)

    def chan(v):
        return v.reshape(1, c_p).astype(jnp.float32)

    row_spec = pl.BlockSpec((tm, tn), lambda i, j: (i, j))
    ch_spec = pl.BlockSpec((1, tn), lambda i, j: (0, j))

    args = [x] + [chan(v) for v in stats]
    in_specs = [row_spec] + [ch_spec] * 4
    bytes_accessed = x.size * x.dtype.itemsize + m_p * c_p * jnp.dtype(out_dtype).itemsize
    if residual is not None:
        args.append(residual)
        in_specs.append(row_spec)
        bytes_accessed += residual.size * residual.dtype.itemsize
    if residual_stats is not None:
        args += [chan(v) for v in residual_stats]
        in_specs += [ch_spec] * 4

    return pl.pallas_call(
        kernel,
        out_shape=jax.ShapeDtypeStruct((m_p, c_p), out_dtype),
        grid=(mt, ct),
        in_specs=in_specs,
        out_specs=row_spec,
        compiler_params=pltpu.CompilerParams(
            dimension_semantics=("parallel", "parallel"),
            vmem_limit_bytes=_VMEM_LIMIT,
        ),
        cost_estimate=pl.CostEstimate(
            flops=int(10 * m_p * c_p), transcendentals=int(2 * c_p),
            bytes_accessed=int(bytes_accessed)),
    )(*args)


# ----------------------------------------------------------------------------
# Glue: im2col (wrapper-side, combined-K padded) + one-time weight packing
# ----------------------------------------------------------------------------
def im2col(x_nhwc, kh, kw, stride, pad, k_target):
    """im2col over UNPADDED channels; only the flattened K gets padded to k_target.

    TODO(synk): replace with in-kernel shifted-window DMA (halo slab + 9 accumulating dots) so
    the kh*kw expansion is never written to HBM.
    """
    n, h, w, c = x_nhwc.shape
    xp = jnp.pad(x_nhwc, ((0, 0), (pad, pad), (pad, pad), (0, 0)))
    ho = (h + 2 * pad - kh) // stride + 1
    wo = (w + 2 * pad - kw) // stride + 1
    cols = [xp[:, dy:dy + stride * ho:stride, dx:dx + stride * wo:stride, :]
            for dy in range(kh) for dx in range(kw)]           # taps ordered (dy, dx)
    col = jnp.concatenate(cols, axis=-1).reshape(n * ho * wo, kh * kw * c)
    if k_target > kh * kw * c:
        col = jnp.pad(col, ((0, 0), (0, k_target - kh * kw * c)))
    return col, (n, ho, wo)


def pack_weight(w_oihw, k_target, cout_p):
    # (Cout, Cin, kh, kw) -> (kh*kw*cin, cout) rows ordered (dy, dx, cin), zero-padded, bf16.
    cout, cin, kh, kw = w_oihw.shape
    w = jnp.transpose(w_oihw, (2, 3, 1, 0)).reshape(kh * kw * cin, cout)
    w = jnp.pad(w, ((0, k_target - kh * kw * cin), (0, cout_p - cout)))
    return w.astype(jnp.bfloat16)


def prepare_params(params, in_channels, out_channels, stride):
    """One-time packing/padding.  Conv biases are intentionally dropped (cancelled by BN)."""
    c_p = _round_up(out_channels, 128)
    k1 = _round_up(9 * in_channels, 128)       # combined-K padding (not 9*round_up(cin,128))
    k2 = _round_up(9 * out_channels, 128)
    # gamma/beta padded with ZEROS so padded channels stay exactly zero through BN/ReLU.
    prepped = {
        "w1": pack_weight(params["w1"], k1, c_p),
        "w2": pack_weight(params["w2"], k2, c_p),
        "g1": _pad_vec(params["g1"], c_p), "be1": _pad_vec(params["be1"], c_p),
        "g2": _pad_vec(params["g2"], c_p), "be2": _pad_vec(params["be2"], c_p),
    }
    if stride != 1 or in_channels != out_channels:
        ks = _round_up(in_channels, 128)
        prepped["ws"] = pack_weight(params["ws"], ks, c_p)
        prepped["gs"] = _pad_vec(params["gs"], c_p)
        prepped["bes"] = _pad_vec(params["bes"], c_p)
    return prepped


# ----------------------------------------------------------------------------
# ResBlock forward (Pallas path)
# ----------------------------------------------------------------------------
@functools.partial(jax.jit, static_argnames=("stride", "out_channels"))
def resblock_forward(x_nchw, prepped, *, stride, out_channels):
    n, cin, h, w = x_nchw.shape
    c_p = prepped["g1"].shape[-1]

    ho = (h + 2 - 3) // stride + 1
    wo = (w + 2 - 3) // stride + 1
    m = n * ho * wo
    tm = min(512 if _IS_V5 else 1024, _round_up(m, 64))
    m_p = _round_up(m, tm)

    # Single fused sweep over the input (transpose + cast; XLA fuses under this jit).
    x_nhwc_bf16 = jnp.transpose(x_nchw, (0, 2, 3, 1)).astype(jnp.bfloat16)

    has_proj = (stride != 1) or (cin != out_channels)
    if has_proj:
        # 1x1 strided conv == strided spatial subsample + GEMM; its BN is fused into the final
        # elementwise kernel (no f32 identity round trip).
        ks = prepped["ws"].shape[0]
        xs = x_nhwc_bf16[:, ::stride, ::stride, :].reshape(m, cin)
        xs = jnp.pad(xs, ((0, m_p - m), (0, ks - cin)))
        ys, ss, qs = conv_gemm_bn_stats(xs, prepped["ws"], tm)
        residual = ys                                   # bf16, pre-BN
        res_stats = (ss, qs, prepped["gs"], prepped["bes"])
        skip_mode_plain = False
    else:
        # Identity skip: residual is the input itself (kept f32 for fidelity of the final add).
        xr = jnp.transpose(x_nchw, (0, 2, 3, 1)).reshape(m, cin)
        residual = jnp.pad(xr, ((0, m_p - m), (0, c_p - cin)))
        res_stats = None
        skip_mode_plain = True

    # ---- conv1 (3x3, stride, pad=1) + bn1 + relu -----------------------------------------
    k1 = prepped["w1"].shape[0]
    col1, _ = im2col(x_nhwc_bf16, 3, 3, stride, 1, k1)
    col1 = jnp.pad(col1, ((0, m_p - m), (0, 0)))
    y1, s1, q1 = conv_gemm_bn_stats(col1, prepped["w1"], tm)
    act1 = batchnorm_apply(y1, (s1, q1, prepped["g1"], prepped["be1"]),
                           m_real=m, tm=tm, relu=True, out_dtype=jnp.bfloat16)

    # ---- conv2 (3x3, stride=1, pad=1) + bn2 + skip(-BN) + relu, fully fused epilogue ------
    k2 = prepped["w2"].shape[0]
    mid = act1[:m, :out_channels].reshape(n, ho, wo, out_channels)   # real channels only
    col2, _ = im2col(mid, 3, 3, 1, 1, k2)
    col2 = jnp.pad(col2, ((0, m_p - m), (0, 0)))
    y2, s2, q2 = conv_gemm_bn_stats(col2, prepped["w2"], tm)
    out = batchnorm_apply(y2, (s2, q2, prepped["g2"], prepped["be2"]),
                          residual=residual,
                          residual_stats=None if skip_mode_plain else res_stats,
                          m_real=m, tm=tm, relu=True, out_dtype=jnp.float32)

    out = out[:m, :out_channels].reshape(n, ho, wo, out_channels)
    return jnp.transpose(out, (0, 3, 1, 2))   # back to NCHW (module contract)


# ----------------------------------------------------------------------------
# Pure-JAX reference (f32, with conv biases — identical math since BN cancels them)
# ----------------------------------------------------------------------------
def _conv_ref(x, w, b, stride, pad):
    out = lax.conv_general_dilated(
        x, w, (stride, stride), [(pad, pad), (pad, pad)],
        dimension_numbers=("NCHW", "OIHW", "NCHW"))
    return out + b.reshape(1, -1, 1, 1)


def _bn_ref(x, gamma, beta, eps=1e-5):
    mean = jnp.mean(x, axis=(0, 2, 3), keepdims=True)
    var = jnp.mean((x - mean) ** 2, axis=(0, 2, 3), keepdims=True)
    return (x - mean) * lax.rsqrt(var + eps) * gamma.reshape(1, -1, 1, 1) + beta.reshape(1, -1, 1, 1)


def resblock_ref(x, params, stride):
    cin, cout = x.shape[1], params["w1"].shape[0]
    if stride != 1 or cin != cout:
        identity = _bn_ref(_conv_ref(x, params["ws"], params["bs"], stride, 0),
                           params["gs"], params["bes"])
    else:
        identity = x
    out = jnp.maximum(_bn_ref(_conv_ref(x, params["w1"], params["b1"], stride, 1),
                              params["g1"], params["be1"]), 0.0)
    out = _bn_ref(_conv_ref(out, params["w2"], params["b2"], 1, 1),
                  params["g2"], params["be2"])
    return jnp.maximum(out + identity, 0.0)


# ----------------------------------------------------------------------------
def init_params(key, in_channels, out_channels):
    ks = jax.random.split(key, 8)
    return {
        "w1": 0.1 * jax.random.normal(ks[0], (out_channels, in_channels, 3, 3), jnp.float32),
        "b1": 0.05 * jax.random.normal(ks[1], (out_channels,), jnp.float32),
        "w2": 0.1 * jax.random.normal(ks[2], (out_channels, out_channels, 3, 3), jnp.float32),
        "b2": 0.05 * jax.random.normal(ks[3], (out_channels,), jnp.float32),
        "g1": jnp.ones((out_channels,), jnp.float32),
        "be1": 0.1 * jax.random.normal(ks[4], (out_channels,), jnp.float32),
        "g2": jnp.ones((out_channels,), jnp.float32),
        "be2": 0.1 * jax.random.normal(ks[5], (out_channels,), jnp.float32),
        # projection skip (used when stride != 1 or channel change)
        "ws": 0.1 * jax.random.normal(ks[6], (out_channels, in_channels, 1, 1), jnp.float32),
        "bs": 0.05 * jax.random.normal(ks[7], (out_channels,), jnp.float32),
        "gs": jnp.ones((out_channels,), jnp.float32),
        "bes": jnp.zeros((out_channels,), jnp.float32),
    }


if __name__ == "__main__":
    root = jax.random.PRNGKey(0)
    kx1, kp1, kx2, kp2 = jax.random.split(root, 4)

    # --- Config 1: projection skip (stride 2, channel change) — fused skip-BN path ---------
    N, Cin, H, W = 2, 4, 16, 16
    Cout, stride = 8, 2
    x = jax.random.normal(kx1, (N, Cin, H, W), jnp.float32)
    params = init_params(kp1, Cin, Cout)
    prepped = prepare_params(params, Cin, Cout, stride)          # packed once, reused per forward

    out = jax.block_until_ready(resblock_forward(x, prepped, stride=stride, out_channels=Cout))
    ref = jax.block_until_ready(resblock_ref(x, params, stride))
    assert out.shape == (N, Cout, H // stride, W // stride), out.shape
    # bf16 MXU operands + bf16 intermediates => ~1% numerics vs. the pure-f32 reference.
    assert jnp.allclose(out, ref, rtol=5e-2, atol=5e-2), float(jnp.max(jnp.abs(out - ref)))

    # --- Config 2: identity skip (stride 1, same channels) — plain-residual path -----------
    N2, C2 = 2, 8
    x2 = jax.random.normal(kx2, (N2, C2, H, W), jnp.float32)
    params2 = init_params(kp2, C2, C2)
    prepped2 = prepare_params(params2, C2, C2, 1)
    out2 = jax.block_until_ready(resblock_forward(x2, prepped2, stride=1, out_channels=C2))
    ref2 = jax.block_until_ready(resblock_ref(x2, params2, 1))
    assert out2.shape == (N2, C2, H, W), out2.shape
    assert jnp.allclose(out2, ref2, rtol=5e-2, atol=5e-2), float(jnp.max(jnp.abs(out2 - ref2)))

    print("KERNEL_OK")
</pallas_src>

<mosaic_0001>
module attributes {stable_mosaic.version = 11 : i64} {
  func.func @kernel(%arg0: i32, %arg1: i32, %arg2: memref<128x128xbf16, #tpu.memory_space<vmem>>, %arg3: memref<1x128xf32, #tpu.memory_space<vmem>>, %arg4: memref<1x128xf32, #tpu.memory_space<vmem>>, %arg5: memref<1x128xf32, #tpu.memory_space<vmem>>, %arg6: memref<1x128xf32, #tpu.memory_space<vmem>>, %arg7: memref<128x128xbf16, #tpu.memory_space<vmem>>) attributes {dimension_semantics = [#tpu.dimension_semantics<parallel>, #tpu.dimension_semantics<parallel>], iteration_bounds = array<i64: 1, 1>, scalar_prefetch = 0 : i64, scratch_operands = 0 : i64, tpu.core_type = #tpu.core_type<tc>, window_params = [{transform_indices = @transform_0, window_bounds = array<i64: 128, 128>}, {transform_indices = @transform_1, window_bounds = array<i64: 1, 128>}, {transform_indices = @transform_2, window_bounds = array<i64: 1, 128>}, {transform_indices = @transform_3, window_bounds = array<i64: 1, 128>}, {transform_indices = @transform_4, window_bounds = array<i64: 1, 128>}, {transform_indices = @transform_5, window_bounds = array<i64: 128, 128>}]} {
    %c0 = arith.constant 0 : index
    %c0_0 = arith.constant 0 : index
    %0 = vector.load %arg3[%c0, %c0_0] : memref<1x128xf32, #tpu.memory_space<vmem>>, vector<1x128xf32>
    %c0_1 = arith.constant 0 : index
    %c0_2 = arith.constant 0 : index
    %1 = vector.load %arg4[%c0_1, %c0_2] : memref<1x128xf32, #tpu.memory_space<vmem>>, vector<1x128xf32>
    %c0_3 = arith.constant 0 : index
    %c0_4 = arith.constant 0 : index
    %2 = vector.load %arg5[%c0_3, %c0_4] : memref<1x128xf32, #tpu.memory_space<vmem>>, vector<1x128xf32>
    %c0_5 = arith.constant 0 : index
    %c0_6 = arith.constant 0 : index
    %3 = vector.load %arg6[%c0_5, %c0_6] : memref<1x128xf32, #tpu.memory_space<vmem>>, vector<1x128xf32>
    %cst = arith.constant 7.812500e-03 : f32
    %4 = vector.broadcast %cst : f32 to vector<1x128xf32>
    %5 = arith.mulf %0, %4 : vector<1x128xf32>
    %cst_7 = arith.constant 7.812500e-03 : f32
    %6 = vector.broadcast %cst_7 : f32 to vector<1x128xf32>
    %7 = arith.mulf %1, %6 : vector<1x128xf32>
    %8 = arith.mulf %5, %5 : vector<1x128xf32>
    %9 = arith.subf %7, %8 : vector<1x128xf32>
    %cst_8 = arith.constant 0.000000e+00 : f32
    %10 = vector.broadcast %cst_8 : f32 to vector<1x128xf32>
    %11 = arith.maximumf %9, %10 : vector<1x128xf32>
    %cst_9 = arith.constant 9.99999974E-6 : f32
    %12 = vector.broadcast %cst_9 : f32 to vector<1x128xf32>
    %13 = arith.addf %11, %12 : vector<1x128xf32>
    %14 = math.rsqrt %13 : vector<1x128xf32>
    %15 = arith.mulf %2, %14 : vector<1x128xf32>
    %16 = arith.mulf %5, %15 : vector<1x128xf32>
    %17 = arith.subf %3, %16 : vector<1x128xf32>
    %c0_10 = arith.constant 0 : index
    %c0_11 = arith.constant 0 : index
    %18 = vector.load %arg2[%c0_10, %c0_11] : memref<128x128xbf16, #tpu.memory_space<vmem>>, vector<128x128xbf16>
    %19 = arith.extf %18 : vector<128x128xbf16> to vector<128x128xf32>
    %20 = vector.broadcast %15 : vector<1x128xf32> to vector<128x128xf32>
    %21 = arith.mulf %19, %20 : vector<128x128xf32>
    %22 = vector.broadcast %17 : vector<1x128xf32> to vector<128x128xf32>
    %23 = arith.addf %21, %22 : vector<128x128xf32>
    %cst_12 = arith.constant 0.000000e+00 : f32
    %24 = vector.broadcast %cst_12 : f32 to vector<128x128xf32>
    %25 = arith.maximumf %23, %24 : vector<128x128xf32>
    %26 = arith.truncf %25 : vector<128x128xf32> to vector<128x128xbf16>
    %c0_13 = arith.constant 0 : index
    %c0_14 = arith.constant 0 : index
    %27 = vector.load %arg7[%c0_13, %c0_14] : memref<128x128xbf16, #tpu.memory_space<vmem>>, vector<128x128xbf16>
    tpu.vector_store %arg7[%c0_13, %c0_14], %26 {strides = array<i32>} : memref<128x128xbf16, #tpu.memory_space<vmem>>, vector<128x128xbf16>,
    return
  }
  func.func @transform_0(%arg0: i32, %arg1: i32) -> (i32, i32) {
    %c0_i32 = arith.constant 0 : i32
    return %arg0, %arg1 : i32, i32
  }
  func.func @transform_1(%arg0: i32, %arg1: i32) -> (i32, i32) {
    %c0_i32 = arith.constant 0 : i32
    %c0_i32_0 = arith.constant 0 : i32
    return %c0_i32, %arg1 : i32, i32
  }
  func.func @transform_2(%arg0: i32, %arg1: i32) -> (i32, i32) {
    %c0_i32 = arith.constant 0 : i32
    %c0_i32_0 = arith.constant 0 : i32
    return %c0_i32, %arg1 : i32, i32
  }
  func.func @transform_3(%arg0: i32, %arg1: i32) -> (i32, i32) {
    %c0_i32 = arith.constant 0 : i32
    %c0_i32_0 = arith.constant 0 : i32
    return %c0_i32, %arg1 : i32, i32
  }
  func.func @transform_4(%arg0: i32, %arg1: i32) -> (i32, i32) {
    %c0_i32 = arith.constant 0 : i32
    %c0_i32_0 = arith.constant 0 : i32
    return %c0_i32, %arg1 : i32, i32
  }
  func.func @transform_5(%arg0: i32, %arg1: i32) -> (i32, i32) {
    %c0_i32 = arith.constant 0 : i32
    return %arg0, %arg1 : i32, i32
  }
}

module attributes {stable_mosaic.version = 11 : i64} {
  func.func @_gemm_bn_stats_kernel(%arg0: i32, %arg1: i32, %arg2: i32, %arg3: memref<128x128xbf16, #tpu.memory_space<vmem>>, %arg4: memref<128x128xbf16, #tpu.memory_space<vmem>>, %arg5: memref<128x128xbf16, #tpu.memory_space<vmem>>, %arg6: memref<1x1x128xf32, #tpu.memory_space<vmem>>, %arg7: memref<1x1x128xf32, #tpu.memory_space<vmem>>, %arg8: memref<128x128xf32, #tpu.memory_space<vmem>>) attributes {dimension_semantics = [#tpu.dimension_semantics<parallel>, #tpu.dimension_semantics<parallel>, #tpu.dimension_semantics<arbitrary>], iteration_bounds = array<i64: 1, 1, 1>, scalar_prefetch = 0 : i64, scratch_operands = 1 : i64, tpu.core_type = #tpu.core_type<tc>, window_params = [{transform_indices = @transform_0, window_bounds = array<i64: 128, 128>}, {transform_indices = @transform_1, window_bounds = array<i64: 128, 128>}, {transform_indices = @transform_2, window_bounds = array<i64: 128, 128>}, {transform_indices = @transform_3, window_bounds = array<i64: 1, 1, 128>}, {transform_indices = @transform_4, window_bounds = array<i64: 1, 1, 128>}]} {
    %c0_i32 = arith.constant 0 : i32
    %0 = arith.cmpi eq, %arg2, %c0_i32 : i32
    %1 = arith.extui %0 : i1 to i32
    %c0_i32_0 = arith.constant 0 : i32
    %2 = arith.cmpi ne, %1, %c0_i32_0 : i32
    scf.if %2 {
      %cst_10 = arith.constant 0.000000e+00 : f32
      %12 = vector.broadcast %cst_10 : f32 to vector<128x128xf32>
      %c0_11 = arith.constant 0 : index
      %c0_12 = arith.constant 0 : index
      %13 = vector.load %arg8[%c0_11, %c0_12] : memref<128x128xf32, #tpu.memory_space<vmem>>, vector<128x128xf32>
      tpu.vector_store %arg8[%c0_11, %c0_12], %12 {strides = array<i32>} : memref<128x128xf32, #tpu.memory_space<vmem>>, vector<128x128xf32>,
    } else {
    }
    %c0 = arith.constant 0 : index
    %c0_1 = arith.constant 0 : index
    %3 = vector.load %arg8[%c0, %c0_1] : memref<128x128xf32, #tpu.memory_space<vmem>>, vector<128x128xf32>
    %c0_2 = arith.constant 0 : index
    %c0_3 = arith.constant 0 : index
    %4 = vector.load %arg3[%c0_2, %c0_3] : memref<128x128xbf16, #tpu.memory_space<vmem>>, vector<128x128xbf16>
    %c0_4 = arith.constant 0 : index
    %c0_5 = arith.constant 0 : index
    %5 = vector.load %arg4[%c0_4, %c0_5] : memref<128x128xbf16, #tpu.memory_space<vmem>>, vector<128x128xbf16>
    %cst = arith.constant dense<0.000000e+00> : vector<128x128xf32>
    %6 = tpu.matmul %4, %5, %cst {dimension_numbers = #tpu.dot_dimension_numbers<[1], [0], [0], [1], [0, 0, 1, 1], [], []>} : vector<128x128xbf16>, vector<128x128xbf16>, vector<128x128xf32> -> vector<128x128xf32>
    %7 = arith.addf %3, %6 : vector<128x128xf32>
    %c0_6 = arith.constant 0 : index
    %c0_7 = arith.constant 0 : index
    %8 = vector.load %arg8[%c0_6, %c0_7] : memref<128x128xf32, #tpu.memory_space<vmem>>, vector<128x128xf32>
    tpu.vector_store %arg8[%c0_6, %c0_7], %7 {strides = array<i32>} : memref<128x128xf32, #tpu.memory_space<vmem>>, vector<128x128xf32>,
    %c0_i32_8 = arith.constant 0 : i32
    %9 = arith.cmpi eq, %arg2, %c0_i32_8 : i32
    %10 = arith.extui %9 : i1 to i32
    %c0_i32_9 = arith.constant 0 : i32
    %11 = arith.cmpi ne, %10, %c0_i32_9 : i32
    scf.if %11 {
      %c0_10 = arith.constant 0 : index
      %c0_11 = arith.constant 0 : index
      %12 = vector.load %arg8[%c0_10, %c0_11] : memref<128x128xf32, #tpu.memory_space<vmem>>, vector<128x128xf32>
      %13 = arith.truncf %12 : vector<128x128xf32> to vector<128x128xbf16>
      %c0_12 = arith.constant 0 : index
      %c0_13 = arith.constant 0 : index
      %14 = vector.load %arg5[%c0_12, %c0_13] : memref<128x128xbf16, #tpu.memory_space<vmem>>, vector<128x128xbf16>
      tpu.vector_store %arg5[%c0_12, %c0_13], %13 {strides = array<i32>} : memref<128x128xbf16, #tpu.memory_space<vmem>>, vector<128x128xbf16>,
      %cst_14 = arith.constant dense<0.000000e+00> : vector<128xf32>
      %15 = vector.multi_reduction <add>, %12, %cst_14 [0] : vector<128x128xf32> to vector<128xf32>
      %16 = vector.shape_cast %15 : vector<128xf32> to vector<1x128xf32>
      %17 = vector.shape_cast %16 : vector<1x128xf32> to vector<1x1x128xf32>
      %c0_15 = arith.constant 0 : index
      %c0_16 = arith.constant 0 : index
      %c0_17 = arith.constant 0 : index
      %18 = vector.load %arg6[%c0_15, %c0_16, %c0_17] : memref<1x1x128xf32, #tpu.memory_space<vmem>>, vector<1x1x128xf32>
      tpu.vector_store %arg6[%c0_15, %c0_16, %c0_17], %17 {strides = array<i32>} : memref<1x1x128xf32, #tpu.memory_space<vmem>>, vector<1x1x128xf32>,
      %19 = arith.mulf %12, %12 : vector<128x128xf32>
      %cst_18 = arith.constant dense<0.000000e+00> : vector<128xf32>
      %20 = vector.multi_reduction <add>, %19, %cst_18 [0] : vector<128x128xf32> to vector<128xf32>
      %21 = vector.shape_cast %20 : vector<128xf32> to vector<1x128xf32>
      %22 = vector.shape_cast %21 : vector<1x128xf32> to vector<1x1x128xf32>
      %c0_19 = arith.constant 0 : index
      %c0_20 = arith.constant 0 : index
      %c0_21 = arith.constant 0 : index
      %23 = vector.load %arg7[%c0_19, %c0_20, %c0_21] : memref<1x1x128xf32, #tpu.memory_space<vmem>>, vector<1x1x128xf32>
      tpu.vector_store %arg7[%c0_19, %c0_20, %c0_21], %22 {strides = array<i32>} : memref<1x1x128xf32, #tpu.memory_space<vmem>>, vector<1x1x128xf32>,
    } else {
    }
    return
  }
  func.func @transform_0(%arg0: i32, %arg1: i32, %arg2: i32) -> (i32, i32) {
    %c0_i32 = arith.constant 0 : i32
    return %arg0, %arg2 : i32, i32
  }
  func.func @transform_1(%arg0: i32, %arg1: i32, %arg2: i32) -> (i32, i32) {
    %c0_i32 = arith.constant 0 : i32
    return %arg2, %arg1 : i32, i32
  }
  func.func @transform_2(%arg0: i32, %arg1: i32, %arg2: i32) -> (i32, i32) {
    %c0_i32 = arith.constant 0 : i32
    return %arg0, %arg1 : i32, i32
  }
  func.func @transform_3(%arg0: i32, %arg1: i32, %arg2: i32) -> (i32, i32, i32) {
    %c0_i32 = arith.constant 0 : i32
    %c0_i32_0 = arith.constant 0 : i32
    return %arg0, %c0_i32, %arg1 : i32, i32, i32
  }
  func.func @transform_4(%arg0: i32, %arg1: i32, %arg2: i32) -> (i32, i32, i32) {
    %c0_i32 = arith.constant 0 : i32
    %c0_i32_0 = arith.constant 0 : i32
    return %arg0, %c0_i32, %arg1 : i32, i32, i32
  }
}

module attributes {stable_mosaic.version = 11 : i64} {
  func.func @kernel(%arg0: i32, %arg1: i32, %arg2: memref<128x128xbf16, #tpu.memory_space<vmem>>, %arg3: memref<1x128xf32, #tpu.memory_space<vmem>>, %arg4: memref<1x128xf32, #tpu.memory_space<vmem>>, %arg5: memref<1x128xf32, #tpu.memory_space<vmem>>, %arg6: memref<1x128xf32, #tpu.memory_space<vmem>>, %arg7: memref<128x128xbf16, #tpu.memory_space<vmem>>, %arg8: memref<1x128xf32, #tpu.memory_space<vmem>>, %arg9: memref<1x128xf32, #tpu.memory_space<vmem>>, %arg10: memref<1x128xf32, #tpu.memory_space<vmem>>, %arg11: memref<1x128xf32, #tpu.memory_space<vmem>>, %arg12: memref<128x128xf32, #tpu.memory_space<vmem>>) attributes {dimension_semantics = [#tpu.dimension_semantics<parallel>, #tpu.dimension_semantics<parallel>], iteration_bounds = array<i64: 1, 1>, scalar_prefetch = 0 : i64, scratch_operands = 0 : i64, tpu.core_type = #tpu.core_type<tc>, window_params = [{transform_indices = @transform_0, window_bounds = array<i64: 128, 128>}, {transform_indices = @transform_1, window_bounds = array<i64: 1, 128>}, {transform_indices = @transform_2, window_bounds = array<i64: 1, 128>}, {transform_indices = @transform_3, window_bounds = array<i64: 1, 128>}, {transform_indices = @transform_4, window_bounds = array<i64: 1, 128>}, {transform_indices = @transform_5, window_bounds = array<i64: 128, 128>}, {transform_indices = @transform_6, window_bounds = array<i64: 1, 128>}, {transform_indices = @transform_7, window_bounds = array<i64: 1, 128>}, {transform_indices = @transform_8, window_bounds = array<i64: 1, 128>}, {transform_indices = @transform_9, window_bounds = array<i64: 1, 128>}, {transform_indices = @transform_10, window_bounds = array<i64: 128, 128>}]} {
    %c0 = arith.constant 0 : index
    %c0_0 = arith.constant 0 : index
    %0 = vector.load %arg3[%c0, %c0_0] : memref<1x128xf32, #tpu.memory_space<vmem>>, vector<1x128xf32>
    %c0_1 = arith.constant 0 : index
    %c0_2 = arith.constant 0 : index
    %1 = vector.load %arg4[%c0_1, %c0_2] : memref<1x128xf32, #tpu.memory_space<vmem>>, vector<1x128xf32>
    %c0_3 = arith.constant 0 : index
    %c0_4 = arith.constant 0 : index
    %2 = vector.load %arg5[%c0_3, %c0_4] : memref<1x128xf32, #tpu.memory_space<vmem>>, vector<1x128xf32>
    %c0_5 = arith.constant 0 : index
    %c0_6 = arith.constant 0 : index
    %3 = vector.load %arg6[%c0_5, %c0_6] : memref<1x128xf32, #tpu.memory_space<vmem>>, vector<1x128xf32>
    %cst = arith.constant 7.812500e-03 : f32
    %4 = vector.broadcast %cst : f32 to vector<1x128xf32>
    %5 = arith.mulf %0, %4 : vector<1x128xf32>
    %cst_7 = arith.constant 7.812500e-03 : f32
    %6 = vector.broadcast %cst_7 : f32 to vector<1x128xf32>
    %7 = arith.mulf %1, %6 : vector<1x128xf32>
    %8 = arith.mulf %5, %5 : vector<1x128xf32>
    %9 = arith.subf %7, %8 : vector<1x128xf32>
    %cst_8 = arith.constant 0.000000e+00 : f32
    %10 = vector.broadcast %cst_8 : f32 to vector<1x128xf32>
    %11 = arith.maximumf %9, %10 : vector<1x128xf32>
    %cst_9 = arith.constant 9.99999974E-6 : f32
    %12 = vector.broadcast %cst_9 : f32 to vector<1x128xf32>
    %13 = arith.addf %11, %12 : vector<1x128xf32>
    %14 = math.rsqrt %13 : vector<1x128xf32>
    %15 = arith.mulf %2, %14 : vector<1x128xf32>
    %16 = arith.mulf %5, %15 : vector<1x128xf32>
    %17 = arith.subf %3, %16 : vector<1x128xf32>
    %c0_10 = arith.constant 0 : index
    %c0_11 = arith.constant 0 : index
    %18 = vector.load %arg2[%c0_10, %c0_11] : memref<128x128xbf16, #tpu.memory_space<vmem>>, vector<128x128xbf16>
    %19 = arith.extf %18 : vector<128x128xbf16> to vector<128x128xf32>
    %20 = vector.broadcast %15 : vector<1x128xf32> to vector<128x128xf32>
    %21 = arith.mulf %19, %20 : vector<128x128xf32>
    %22 = vector.broadcast %17 : vector<1x128xf32> to vector<128x128xf32>
    %23 = arith.addf %21, %22 : vector<128x128xf32>
    %c0_12 = arith.constant 0 : index
    %c0_13 = arith.constant 0 : index
    %24 = vector.load %arg8[%c0_12, %c0_13] : memref<1x128xf32, #tpu.memory_space<vmem>>, vector<1x128xf32>
    %c0_14 = arith.constant 0 : index
    %c0_15 = arith.constant 0 : index
    %25 = vector.load %arg9[%c0_14, %c0_15] : memref<1x128xf32, #tpu.memory_space<vmem>>, vector<1x128xf32>
    %c0_16 = arith.constant 0 : index
    %c0_17 = arith.constant 0 : index
    %26 = vector.load %arg10[%c0_16, %c0_17] : memref<1x128xf32, #tpu.memory_space<vmem>>, vector<1x128xf32>
    %c0_18 = arith.constant 0 : index
    %c0_19 = arith.constant 0 : index
    %27 = vector.load %arg11[%c0_18, %c0_19] : memref<1x128xf32, #tpu.memory_space<vmem>>, vector<1x128xf32>
    %cst_20 = arith.constant 7.812500e-03 : f32
    %28 = vector.broadcast %cst_20 : f32 to vector<1x128xf32>
    %29 = arith.mulf %24, %28 : vector<1x128xf32>
    %cst_21 = arith.constant 7.812500e-03 : f32
    %30 = vector.broadcast %cst_21 : f32 to vector<1x128xf32>
    %31 = arith.mulf %25, %30 : vector<1x128xf32>
    %32 = arith.mulf %29, %29 : vector<1x128xf32>
    %33 = arith.subf %31, %32 : vector<1x128xf32>
    %cst_22 = arith.constant 0.000000e+00 : f32
    %34 = vector.broadcast %cst_22 : f32 to vector<1x128xf32>
    %35 = arith.maximumf %33, %34 : vector<1x128xf32>
    %cst_23 = arith.constant 9.99999974E-6 : f32
    %36 = vector.broadcast %cst_23 : f32 to vector<1x128xf32>
    %37 = arith.addf %35, %36 : vector<1x128xf32>
    %38 = math.rsqrt %37 : vector<1x128xf32>
    %39 = arith.mulf %26, %38 : vector<1x128xf32>
    %40 = arith.mulf %29, %39 : vector<1x128xf32>
    %41 = arith.subf %27, %40 : vector<1x128xf32>
    %c0_24 = arith.constant 0 : index
    %c0_25 = arith.constant 0 : index
    %42 = vector.load %arg7[%c0_24, %c0_25] : memref<128x128xbf16, #tpu.memory_space<vmem>>, vector<128x128xbf16>
    %43 = arith.extf %42 : vector<128x128xbf16> to vector<128x128xf32>
    %44 = vector.broadcast %39 : vector<1x128xf32> to vector<128x128xf32>
    %45 = arith.mulf %43, %44 : vector<128x128xf32>
    %46 = arith.addf %23, %45 : vector<128x128xf32>
    %47 = vector.broadcast %41 : vector<1x128xf32> to vector<128x128xf32>
    %48 = arith.addf %46, %47 : vector<128x128xf32>
    %cst_26 = arith.constant 0.000000e+00 : f32
    %49 = vector.broadcast %cst_26 : f32 to vector<128x128xf32>
    %50 = arith.maximumf %48, %49 : vector<128x128xf32>
    %c0_27 = arith.constant 0 : index
    %c0_28 = arith.constant 0 : index
    %51 = vector.load %arg12[%c0_27, %c0_28] : memref<128x128xf32, #tpu.memory_space<vmem>>, vector<128x128xf32>
    tpu.vector_store %arg12[%c0_27, %c0_28], %50 {strides = array<i32>} : memref<128x128xf32, #tpu.memory_space<vmem>>, vector<128x128xf32>,
    return
  }
  func.func @transform_0(%arg0: i32, %arg1: i32) -> (i32, i32) {
    %c0_i32 = arith.constant 0 : i32
    return %arg0, %arg1 : i32, i32
  }
  func.func @transform_1(%arg0: i32, %arg1: i32) -> (i32, i32) {
    %c0_i32 = arith.constant 0 : i32
    %c0_i32_0 = arith.constant 0 : i32
    return %c0_i32, %arg1 : i32, i32
  }
  func.func @transform_2(%arg0: i32, %arg1: i32) -> (i32, i32) {
    %c0_i32 = arith.constant 0 : i32
    %c0_i32_0 = arith.constant 0 : i32
    return %c0_i32, %arg1 : i32, i32
  }
  func.func @transform_3(%arg0: i32, %arg1: i32) -> (i32, i32) {
    %c0_i32 = arith.constant 0 : i32
    %c0_i32_0 = arith.constant 0 : i32
    return %c0_i32, %arg1 : i32, i32
  }
  func.func @transform_4(%arg0: i32, %arg1: i32) -> (i32, i32) {
    %c0_i32 = arith.constant 0 : i32
    %c0_i32_0 = arith.constant 0 : i32
    return %c0_i32, %arg1 : i32, i32
  }
  func.func @transform_5(%arg0: i32, %arg1: i32) -> (i32, i32) {
    %c0_i32 = arith.constant 0 : i32
    return %arg0, %arg1 : i32, i32
  }
  func.func @transform_6(%arg0: i32, %arg1: i32) -> (i32, i32) {
    %c0_i32 = arith.constant 0 : i32
    %c0_i32_0 = arith.constant 0 : i32
    return %c0_i32, %arg1 : i32, i32
  }
  func.func @transform_7(%arg0: i32, %arg1: i32) -> (i32, i32) {
    %c0_i32 = arith.constant 0 : i32
    %c0_i32_0 = arith.constant 0 : i32
    return %c0_i32, %arg1 : i32, i32
  }
  func.func @transform_8(%arg0: i32, %arg1: i32) -> (i32, i32) {
    %c0_i32 = arith.constant 0 : i32
    %c0_i32_0 = arith.constant 0 : i32
    return %c0_i32, %arg1 : i32, i32
  }
  func.func @transform_9(%arg0: i32, %arg1: i32) -> (i32, i32) {
    %c0_i32 = arith.constant 0 : i32
    %c0_i32_0 = arith.constant 0 : i32
    return %c0_i32, %arg1 : i32, i32
  }
  func.func @transform_10(%arg0: i32, %arg1: i32) -> (i32, i32) {
    %c0_i32 = arith.constant 0 : i32
    return %arg0, %arg1 : i32, i32
  }
}

</mosaic_0001>

<llo_original>
// kernel: resblock_forward.7
$region0: #{resblock_forward.7}
  #allocation0 [shape = 'u32[]', space=smem, size = 0x4, offset = 0x4, fixed_abs, tag = 'smem constant byte address 0x4 - core index']
  #allocation1 [shape = 'u32[72,128]{1,0:T(1,128)}', space=vmem, size = 0x9000, scoped, tag = 'internal scratch']
  %s0 = inlined_call_operand.vmem [shape: bf16[128,128], index: 0, kind: input, shape index: {}]
  %s1 = inlined_call_operand.vmem [shape: f32[1,128], index: 1, kind: input, shape index: {}]
  %s2 = inlined_call_operand.vmem [shape: f32[1,128], index: 2, kind: input, shape index: {}]
  %s3 = inlined_call_operand.vmem [shape: f32[1,128], index: 3, kind: input, shape index: {}]
  %s4 = inlined_call_operand.vmem [shape: f32[1,128], index: 4, kind: input, shape index: {}]
  %s5 = inlined_call_operand.vmem [shape: bf16[128,128], index: 5, kind: output, shape index: {}]
  %s6 = sld [smem:[#allocation0]]
  $region30: #{resblock_forward.7} parent=0
    _
  %s8 = ssub.s32 1, %s6
  %s9 = scalar_select 0, %s8, %s6
  // Predicated region
  $region2: #{resblock_forward.7} parent=0 // pred_check
    _
  $region3: #{resblock_forward.7} parent=0 // pred_check_branch
    %11 = sbr.rel (0) target = $region5
  $region4: #{resblock_forward.7} parent=0 // pred_region
    _
  $region5: #{resblock_forward.7} parent=0 // pred_fallthru
    _
  // Predicated region
  $region6: #{resblock_forward.7} parent=0 // pred_check
    _
  $region7: #{resblock_forward.7} parent=0 // pred_check_branch
    %13 = sbr.rel (0) target = $region9
  $region8: #{resblock_forward.7} parent=0 // pred_region
    _
  $region9: #{resblock_forward.7} parent=0 // pred_fallthru
    _
  // Predicated region
  $region10: #{resblock_forward.7} parent=0 // pred_check
    _
  $region11: #{resblock_forward.7} parent=0 // pred_check_branch
    %15 = sbr.rel (0) target = $region13
  $region12: #{resblock_forward.7} parent=0 // pred_region
    _
  $region13: #{resblock_forward.7} parent=0 // pred_fallthru
    _
  // Predicated region
  $region14: #{resblock_forward.7} parent=0 // pred_check
    _
  $region15: #{resblock_forward.7} parent=0 // pred_check_branch
    %17 = sbr.rel (0) target = $region17
  $region16: #{resblock_forward.7} parent=0 // pred_region
    _
  $region17: #{resblock_forward.7} parent=0 // pred_fallthru
    _
  // Predicated region
  $region18: #{resblock_forward.7} parent=0 // pred_check
    _
  $region19: #{resblock_forward.7} parent=0 // pred_check_branch
    %19 = sbr.rel (0) target = $region21
  $region20: #{resblock_forward.7} parent=0 // pred_region
    _
  $region21: #{resblock_forward.7} parent=0 // pred_fallthru
    _
  %v20 = vld [vmem:[%s1] sm:$0x1]
  %v21 = vld [vmem:[%s2] sm:$0x1]
  %v22 = vld [vmem:[%s3] sm:$0x1]
  %v23 = vld [vmem:[%s4] sm:$0x1]
  %v24 = vmul.f32 %v20, 0.0078125
  %v25 = vmul.f32 %v21, 0.0078125
  %v26 = vmul.f32 %v24, %v24
  %v27 = vsub.f32 %v25, %v26
  %v28 = vmax.f32 %v27, 0.0
  %v29 = vadd.f32 %v28, 1e-05
  %v30 = vrsqrt.pop %v29
  %v31 = vmul.f32 %v30, %v29
  %v32 = vmul.f32 %v31, %v30
  %v33 = vmul.f32 0.5, %v32
  %v34 = vsub.f32 1.5, %v33
  %v35 = vmul.f32 %v30, %v34
  %vm36 = vweird.f32 %v29
  %vm37 = vweird.f32 %v30
  %vm38 = vmor %vm36, %vm37
  %v39 = vsel %vm38, %v30, %v35
  %v40 = vmul.f32 %v22, %v39
  %v41 = vmul.f32 %v24, %v40
  %v42 = vsub.f32 %v23, %v41
  %v43 = vld [vmem:[%s0] sm:$0xf]
  %v44 = vld [vmem:[%s0 + $0x4] sm:$0xf]
  %v45 = vld [vmem:[%s0 + $0x8] sm:$0xf]
  %v46 = vld [vmem:[%s0 + $0xc] sm:$0xf]
  %v47 = vld [vmem:[%s0 + $0x10] sm:$0xf]
  %v48 = vld [vmem:[%s0 + $0x14] sm:$0xf]
  %v49 = vld [vmem:[%s0 + $0x18] sm:$0xf]
  %v50 = vld [vmem:[%s0 + $0x1c] sm:$0xf]
  %v51 = vld [vmem:[%s0 + $0x20] sm:$0xf]
  %v52 = vld [vmem:[%s0 + $0x24] sm:$0xf]
  %v53 = vld [vmem:[%s0 + $0x28] sm:$0xf]
  %v54 = vld [vmem:[%s0 + $0x2c] sm:$0xf]
  %v55 = vld [vmem:[%s0 + $0x30] sm:$0xf]
  %v56 = vld [vmem:[%s0 + $0x34] sm:$0xf]
  %v57 = vld [vmem:[%s0 + $0x38] sm:$0xf]
  %v58 = vld [vmem:[%s0 + $0x3c] sm:$0xf]
  %v59 = vunpack.c.l.bf16 %v43
  %v60 = vunpack.c.l.bf16 %v44
  %v61 = vunpack.c.l.bf16 %v45
  %v62 = vunpack.c.l.bf16 %v46
  %v63 = vunpack.c.l.bf16 %v47
  %v64 = vunpack.c.l.bf16 %v48
  %v65 = vunpack.c.l.bf16 %v49
  %v66 = vunpack.c.l.bf16 %v50
  %v67 = vunpack.c.l.bf16 %v51
  %v68 = vunpack.c.l.bf16 %v52
  %v69 = vunpack.c.l.bf16 %v53
  %v70 = vunpack.c.l.bf16 %v54
  %v71 = vunpack.c.l.bf16 %v55
  %v72 = vunpack.c.l.bf16 %v56
  %v73 = vunpack.c.l.bf16 %v57
  %v74 = vunpack.c.l.bf16 %v58
  %v76 = vperm.slane %v40, 0
  %v78 = vmul.f32 %v59, %v76
  %v79 = vmul.f32 %v60, %v76
  %v80 = vmul.f32 %v61, %v76
  %v81 = vmul.f32 %v62, %v76
  %v82 = vmul.f32 %v63, %v76
  %v83 = vmul.f32 %v64, %v76
  %v84 = vmul.f32 %v65, %v76
  %v85 = vmul.f32 %v66, %v76
  %v86 = vmul.f32 %v67, %v76
  %v87 = vmul.f32 %v68, %v76
  %v88 = vmul.f32 %v69, %v76
  %v89 = vmul.f32 %v70, %v76
  %v90 = vmul.f32 %v71, %v76
  %v91 = vmul.f32 %v72, %v76
  %v92 = vmul.f32 %v73, %v76
  %v93 = vmul.f32 %v74, %v76
  %v95 = vperm.slane %v42, 0
  %v97 = vadd.f32 %v78, %v95
  %v98 = vadd.f32 %v79, %v95
  %v99 = vadd.f32 %v80, %v95
  %v100 = vadd.f32 %v81, %v95
  %v101 = vadd.f32 %v82, %v95
  %v102 = vadd.f32 %v83, %v95
  %v103 = vadd.f32 %v84, %v95
  %v104 = vadd.f32 %v85, %v95
  %v105 = vadd.f32 %v86, %v95
  %v106 = vadd.f32 %v87, %v95
  %v107 = vadd.f32 %v88, %v95
  %v108 = vadd.f32 %v89, %v95
  %v109 = vadd.f32 %v90, %v95
  %v110 = vadd.f32 %v91, %v95
  %v111 = vadd.f32 %v92, %v95
  %v112 = vadd.f32 %v93, %v95
  %v113 = vmax.f32 %v97, 0.0
  %v114 = vmax.f32 %v98, 0.0
  %v115 = vmax.f32 %v99, 0.0
  %v116 = vmax.f32 %v100, 0.0
  %v117 = vmax.f32 %v101, 0.0
  %v118 = vmax.f32 %v102, 0.0
  %v119 = vmax.f32 %v103, 0.0
  %v120 = vmax.f32 %v104, 0.0
  %v121 = vmax.f32 %v105, 0.0
  %v122 = vmax.f32 %v106, 0.0
  %v123 = vmax.f32 %v107, 0.0
  %v124 = vmax.f32 %v108, 0.0
  %v125 = vmax.f32 %v109, 0.0
  %v126 = vmax.f32 %v110, 0.0
  %v127 = vmax.f32 %v111, 0.0
  %v128 = vmax.f32 %v112, 0.0
  %v129 = vpack.c.bf16 %v113, %v113
  %v130 = vpack.c.bf16 %v114, %v114
  %v131 = vpack.c.bf16 %v115, %v115
  %v132 = vpack.c.bf16 %v116, %v116
  %v133 = vpack.c.bf16 %v117, %v117
  %v134 = vpack.c.bf16 %v118, %v118
  %v135 = vpack.c.bf16 %v119, %v119
  %v136 = vpack.c.bf16 %v120, %v120
  %v137 = vpack.c.bf16 %v121, %v121
  %v138 = vpack.c.bf16 %v122, %v122
  %v139 = vpack.c.bf16 %v123, %v123
  %v140 = vpack.c.bf16 %v124, %v124
  %v141 = vpack.c.bf16 %v125, %v125
  %v142 = vpack.c.bf16 %v126, %v126
  %v143 = vpack.c.bf16 %v127, %v127
  %v144 = vpack.c.bf16 %v128, %v128
  %145 = vst [vmem:[%s5] sm:$0xf] %v129
  %146 = vst [vmem:[%s5 + $0x4] sm:$0xf] %v130
  %147 = vst [vmem:[%s5 + $0x8] sm:$0xf] %v131
  %148 = vst [vmem:[%s5 + $0xc] sm:$0xf] %v132
  %149 = vst [vmem:[%s5 + $0x10] sm:$0xf] %v133
  %150 = vst [vmem:[%s5 + $0x14] sm:$0xf] %v134
  %151 = vst [vmem:[%s5 + $0x18] sm:$0xf] %v135
  %152 = vst [vmem:[%s5 + $0x1c] sm:$0xf] %v136
  %153 = vst [vmem:[%s5 + $0x20] sm:$0xf] %v137
  %154 = vst [vmem:[%s5 + $0x24] sm:$0xf] %v138
  %155 = vst [vmem:[%s5 + $0x28] sm:$0xf] %v139
  %156 = vst [vmem:[%s5 + $0x2c] sm:$0xf] %v140
  %157 = vst [vmem:[%s5 + $0x30] sm:$0xf] %v141
  %158 = vst [vmem:[%s5 + $0x34] sm:$0xf] %v142
  %159 = vst [vmem:[%s5 + $0x38] sm:$0xf] %v143
  %160 = vst [vmem:[%s5 + $0x3c] sm:$0xf] %v144
  // Predicated region
  $region22: #{resblock_forward.7} parent=0 // pred_check
    _
  $region23: #{resblock_forward.7} parent=0 // pred_check_branch
    %162 = sbr.rel (0) target = $region25
  $region24: #{resblock_forward.7} parent=0 // pred_region
    _
  $region25: #{resblock_forward.7} parent=0 // pred_fallthru
    _
  // Predicated region
  $region26: #{resblock_forward.7} parent=0 // pred_check
    _
  $region27: #{resblock_forward.7} parent=0 // pred_check_branch
    %164 = sbr.rel (0) target = $region29
  $region28: #{resblock_forward.7} parent=0 // pred_region
    _
  $region29: #{resblock_forward.7} parent=0 // pred_fallthru
    _

// kernel: resblock_forward.6
$region0: #{resblock_forward.6}
  #allocation0 [shape = 'u32[]', space=smem, size = 0x4, offset = 0x4, fixed_abs, tag = 'smem constant byte address 0x4 - core index']
  #allocation1 [shape = 'u32[72,128]{1,0:T(1,128)}', space=vmem, size = 0x9000, scoped, tag = 'internal scratch']
  #allocation2 [shape = 'f32[128,128]{1,0:T(8,128)}', space=vmem, size = 0x10000, scoped, tag = 'scratch operand']
  %s0 = inlined_call_operand.vmem [shape: bf16[128,128], index: 0, kind: input, shape index: {}]
  %s1 = inlined_call_operand.vmem [shape: bf16[128,128], index: 1, kind: input, shape index: {}]
  %s2 = inlined_call_operand.vmem [shape: bf16[128,128], index: 2, kind: output, shape index: {0}]
  %s3 = inlined_call_operand.vmem [shape: f32[1,1,128], index: 3, kind: output, shape index: {1}]
  %s4 = inlined_call_operand.vmem [shape: f32[1,1,128], index: 4, kind: output, shape index: {2}]
  %5 = xla_tuple %s2, %s3, %s4
  %s6 = sld [smem:[#allocation0]]
  $region42: #{resblock_forward.6} parent=0
    _
  %s8 = ssub.s32 1, %s6
  %s9 = scalar_select 0, %s8, %s6
  // Predicated region
  $region2: #{resblock_forward.6} parent=0 // pred_check
    _
  $region3: #{resblock_forward.6} parent=0 // pred_check_branch
    %11 = sbr.rel (0) target = $region5
  $region4: #{resblock_forward.6} parent=0 // pred_region
    _
  $region5: #{resblock_forward.6} parent=0 // pred_fallthru
    _
  // Predicated region
  $region6: #{resblock_forward.6} parent=0 // pred_check
    _
  $region7: #{resblock_forward.6} parent=0 // pred_check_branch
    %13 = sbr.rel (0) target = $region9
  $region8: #{resblock_forward.6} parent=0 // pred_region
    _
  $region9: #{resblock_forward.6} parent=0 // pred_fallthru
    _
  %p14 = scmp.eq.s32.totalorder 0, 0
  // Predicated region
  $region10: #{resblock_forward.6} parent=0 // pred_check
    %p15 = pneg %p14
  $region11: #{resblock_forward.6} parent=0 // pred_check_branch
    %17 = sbr.rel (%p15) target = $region13
  $region12: #{resblock_forward.6} parent=0 // pred_region
    %18 = vst [vmem:[#allocation2] sm:$0xff] 0.0
    %19 = vst [vmem:[#allocation2 + $0x8] sm:$0xff] 0.0
    %20 = vst [vmem:[#allocation2 + $0x10] sm:$0xff] 0.0
    %21 = vst [vmem:[#allocation2 + $0x18] sm:$0xff] 0.0
    %22 = vst [vmem:[#allocation2 + $0x20] sm:$0xff] 0.0
    %23 = vst [vmem:[#allocation2 + $0x28] sm:$0xff] 0.0
    %24 = vst [vmem:[#allocation2 + $0x30] sm:$0xff] 0.0
    %25 = vst [vmem:[#allocation2 + $0x38] sm:$0xff] 0.0
    %26 = vst [vmem:[#allocation2 + $0x40] sm:$0xff] 0.0
    %27 = vst [vmem:[#allocation2 + $0x48] sm:$0xff] 0.0
    %28 = vst [vmem:[#allocation2 + $0x50] sm:$0xff] 0.0
    %29 = vst [vmem:[#allocation2 + $0x58] sm:$0xff] 0.0
    %30 = vst [vmem:[#allocation2 + $0x60] sm:$0xff] 0.0
    %31 = vst [vmem:[#allocation2 + $0x68] sm:$0xff] 0.0
    %32 = vst [vmem:[#allocation2 + $0x70] sm:$0xff] 0.0
    %33 = vst [vmem:[#allocation2 + $0x78] sm:$0xff] 0.0
  $region13: #{resblock_forward.6} parent=0 // pred_fallthru
    _
  %v34 = vld [vmem:[#allocation2] sm:$0xff]
  %v35 = vld [vmem:[#allocation2 + $0x8] sm:$0xff]
  %v36 = vld [vmem:[#allocation2 + $0x10] sm:$0xff]
  %v37 = vld [vmem:[#allocation2 + $0x18] sm:$0xff]
  %v38 = vld [vmem:[#allocation2 + $0x20] sm:$0xff]
  %v39 = vld [vmem:[#allocation2 + $0x28] sm:$0xff]
  %v40 = vld [vmem:[#allocation2 + $0x30] sm:$0xff]
  %v41 = vld [vmem:[#allocation2 + $0x38] sm:$0xff]
  %v42 = vld [vmem:[#allocation2 + $0x40] sm:$0xff]
  %v43 = vld [vmem:[#allocation2 + $0x48] sm:$0xff]
  %v44 = vld [vmem:[#allocation2 + $0x50] sm:$0xff]
  %v45 = vld [vmem:[#allocation2 + $0x58] sm:$0xff]
  %v46 = vld [vmem:[#allocation2 + $0x60] sm:$0xff]
  %v47 = vld [vmem:[#allocation2 + $0x68] sm:$0xff]
  %v48 = vld [vmem:[#allocation2 + $0x70] sm:$0xff]
  %v49 = vld [vmem:[#allocation2 + $0x78] sm:$0xff]
  %v50 = vld [vmem:[%s0] sm:$0xf]
  %v51 = vld [vmem:[%s0 + $0x4] sm:$0xf]
  %v52 = vld [vmem:[%s0 + $0x8] sm:$0xf]
  %v53 = vld [vmem:[%s0 + $0xc] sm:$0xf]
  %v54 = vld [vmem:[%s0 + $0x10] sm:$0xf]
  %v55 = vld [vmem:[%s0 + $0x14] sm:$0xf]
  %v56 = vld [vmem:[%s0 + $0x18] sm:$0xf]
  %v57 = vld [vmem:[%s0 + $0x1c] sm:$0xf]
  %v58 = vld [vmem:[%s0 + $0x20] sm:$0xf]
  %v59 = vld [vmem:[%s0 + $0x24] sm:$0xf]
  %v60 = vld [vmem:[%s0 + $0x28] sm:$0xf]
  %v61 = vld [vmem:[%s0 + $0x2c] sm:$0xf]
  %v62 = vld [vmem:[%s0 + $0x30] sm:$0xf]
  %v63 = vld [vmem:[%s0 + $0x34] sm:$0xf]
  %v64 = vld [vmem:[%s0 + $0x38] sm:$0xf]
  %v65 = vld [vmem:[%s0 + $0x3c] sm:$0xf]
  %v66 = vld [vmem:[%s1] sm:$0xf]
  %v67 = vld [vmem:[%s1 + $0x4] sm:$0xf]
  %v68 = vld [vmem:[%s1 + $0x8] sm:$0xf]
  %v69 = vld [vmem:[%s1 + $0xc] sm:$0xf]
  %v70 = vld [vmem:[%s1 + $0x10] sm:$0xf]
  %v71 = vld [vmem:[%s1 + $0x14] sm:$0xf]
  %v72 = vld [vmem:[%s1 + $0x18] sm:$0xf]
  %v73 = vld [vmem:[%s1 + $0x1c] sm:$0xf]
  %v74 = vld [vmem:[%s1 + $0x20] sm:$0xf]
  %v75 = vld [vmem:[%s1 + $0x24] sm:$0xf]
  %v76 = vld [vmem:[%s1 + $0x28] sm:$0xf]
  %v77 = vld [vmem:[%s1 + $0x2c] sm:$0xf]
  %v78 = vld [vmem:[%s1 + $0x30] sm:$0xf]
  %v79 = vld [vmem:[%s1 + $0x34] sm:$0xf]
  %v80 = vld [vmem:[%s1 + $0x38] sm:$0xf]
  %v81 = vld [vmem:[%s1 + $0x3c] sm:$0xf]
  %v98 = vunpack.c.l.b16 %v50
  %v99 = vunpack.c.l.b16 %v51
  %v100 = vunpack.c.l.b16 %v52
  %v101 = vunpack.c.l.b16 %v53
  %v102 = vunpack.c.l.b16 %v54
  %v103 = vunpack.c.l.b16 %v55
  %v104 = vunpack.c.l.b16 %v56
  %v105 = vunpack.c.l.b16 %v57
  %v106 = vunpack.c.l.b16 %v58
  %v107 = vunpack.c.l.b16 %v59
  %v108 = vunpack.c.l.b16 %v60
  %v109 = vunpack.c.l.b16 %v61
  %v110 = vunpack.c.l.b16 %v62
  %v111 = vunpack.c.l.b16 %v63
  %v112 = vunpack.c.l.b16 %v64
  %v113 = vunpack.c.l.b16 %v65
  %v114 = vpack.c.b16 %v99, %v98
  %v115 = vpack.c.b16 %v101, %v100
  %v116 = vpack.c.b16 %v103, %v102
  %v117 = vpack.c.b16 %v105, %v104
  %v118 = vpack.c.b16 %v107, %v106
  %v119 = vpack.c.b16 %v109, %v108
  %v120 = vpack.c.b16 %v111, %v110
  %v121 = vpack.c.b16 %v113, %v112
  %v146 = vunpack.c.l.b16 %v66
  %v147 = vunpack.c.l.b16 %v67
  %v148 = vunpack.c.l.b16 %v68
  %v149 = vunpack.c.l.b16 %v69
  %v150 = vunpack.c.l.b16 %v70
  %v151 = vunpack.c.l.b16 %v71
  %v152 = vunpack.c.l.b16 %v72
  %v153 = vunpack.c.l.b16 %v73
  %v154 = vunpack.c.l.b16 %v74
  %v155 = vunpack.c.l.b16 %v75
  %v156 = vunpack.c.l.b16 %v76
  %v157 = vunpack.c.l.b16 %v77
  %v158 = vunpack.c.l.b16 %v78
  %v159 = vunpack.c.l.b16 %v79
  %v160 = vunpack.c.l.b16 %v80
  %v161 = vunpack.c.l.b16 %v81
  %v162 = vpack.c.b16 %v147, %v146
  %v163 = vpack.c.b16 %v149, %v148
  %v164 = vpack.c.b16 %v151, %v150
  %v165 = vpack.c.b16 %v153, %v152
  %v166 = vpack.c.b16 %v155, %v154
  %v167 = vpack.c.b16 %v157, %v156
  %v168 = vpack.c.b16 %v159, %v158
  %v169 = vpack.c.b16 %v161, %v160
  %178 = vmatpush.bf16.msra.mxu0 %v169
  %179 = vmatpush.bf16.msra.mxu0 %v168
  %180 = vmatpush.bf16.msra.mxu0 %v167
  %181 = vmatpush.bf16.msra.mxu0 %v166
  %182 = vmatpush.bf16.msra.mxu0 %v165
  %183 = vmatpush.bf16.msra.mxu0 %v164
  %184 = vmatpush.bf16.msra.mxu0 %v163
  %185 = vmatpush.bf16.msra.mxu0 %v162
  %186 = vmatmul.bf16.gmra.mxu0 %v114
  %v187 = vpop.f32.mrf.mxu0
  %v188 = vadd.f32 0.0, %v187
  %v189 = vpop.f32.mrf.mxu0
  %v190 = vadd.f32 0.0, %v189
  %191 = vmatmul.bf16.gmra.mxu0 %v115
  %v192 = vpop.f32.mrf.mxu0
  %v193 = vadd.f32 0.0, %v192
  %v194 = vpop.f32.mrf.mxu0
  %v195 = vadd.f32 0.0, %v194
  %196 = vmatmul.bf16.gmra.mxu0 %v116
  %v197 = vpop.f32.mrf.mxu0
  %v198 = vadd.f32 0.0, %v197
  %v199 = vpop.f32.mrf.mxu0
  %v200 = vadd.f32 0.0, %v199
  %201 = vmatmul.bf16.gmra.mxu0 %v117
  %v202 = vpop.f32.mrf.mxu0
  %v203 = vadd.f32 0.0, %v202
  %v204 = vpop.f32.mrf.mxu0
  %v205 = vadd.f32 0.0, %v204
  %206 = vmatmul.bf16.gmra.mxu0 %v118
  %v207 = vpop.f32.mrf.mxu0
  %v208 = vadd.f32 0.0, %v207
  %v209 = vpop.f32.mrf.mxu0
  %v210 = vadd.f32 0.0, %v209
  %211 = vmatmul.bf16.gmra.mxu0 %v119
  %v212 = vpop.f32.mrf.mxu0
  %v213 = vadd.f32 0.0, %v212
  %v214 = vpop.f32.mrf.mxu0
  %v215 = vadd.f32 0.0, %v214
  %216 = vmatmul.bf16.gmra.mxu0 %v120
  %v217 = vpop.f32.mrf.mxu0
  %v218 = vadd.f32 0.0, %v217
  %v219 = vpop.f32.mrf.mxu0
  %v220 = vadd.f32 0.0, %v219
  %221 = vmatmul.bf16.gmra.mxu0 %v121
  %v222 = vpop.f32.mrf.mxu0
  %v223 = vadd.f32 0.0, %v222
  %v224 = vpop.f32.mrf.mxu0
  %v225 = vadd.f32 0.0, %v224
  %226 = vdwg.mxu0
  %v227 = vadd.f32 %v34, %v188
  %v228 = vadd.f32 %v35, %v190
  %v229 = vadd.f32 %v36, %v193
  %v230 = vadd.f32 %v37, %v195
  %v231 = vadd.f32 %v38, %v198
  %v232 = vadd.f32 %v39, %v200
  %v233 = vadd.f32 %v40, %v203
  %v234 = vadd.f32 %v41, %v205
  %v235 = vadd.f32 %v42, %v208
  %v236 = vadd.f32 %v43, %v210
  %v237 = vadd.f32 %v44, %v213
  %v238 = vadd.f32 %v45, %v215
  %v239 = vadd.f32 %v46, %v218
  %v240 = vadd.f32 %v47, %v220
  %v241 = vadd.f32 %v48, %v223
  %v242 = vadd.f32 %v49, %v225
  %243 = vst [vmem:[#allocation2] sm:$0xff] %v227
  %244 = vst [vmem:[#allocation2 + $0x8] sm:$0xff] %v228
  %245 = vst [vmem:[#allocation2 + $0x10] sm:$0xff] %v229
  %246 = vst [vmem:[#allocation2 + $0x18] sm:$0xff] %v230
  %247 = vst [vmem:[#allocation2 + $0x20] sm:$0xff] %v231
  %248 = vst [vmem:[#allocation2 + $0x28] sm:$0xff] %v232
  %249 = vst [vmem:[#allocation2 + $0x30] sm:$0xff] %v233
  %250 = vst [vmem:[#allocation2 + $0x38] sm:$0xff] %v234
  %251 = vst [vmem:[#allocation2 + $0x40] sm:$0xff] %v235
  %252 = vst [vmem:[#allocation2 + $0x48] sm:$0xff] %v236
  %253 = vst [vmem:[#allocation2 + $0x50] sm:$0xff] %v237
  %254 = vst [vmem:[#allocation2 + $0x58] sm:$0xff] %v238
  %255 = vst [vmem:[#allocation2 + $0x60] sm:$0xff] %v239
  %256 = vst [vmem:[#allocation2 + $0x68] sm:$0xff] %v240
  %257 = vst [vmem:[#allocation2 + $0x70] sm:$0xff] %v241
  %258 = vst [vmem:[#allocation2 + $0x78] sm:$0xff] %v242
  // Predicated region
  $region14: #{resblock_forward.6} parent=0 // pred_check
    %p259 = pneg %p14
  $region15: #{resblock_forward.6} parent=0 // pred_check_branch
    %261 = sbr.rel (%p259) target = $region17
  $region16: #{resblock_forward.6} parent=0 // pred_region
    %v262 = vld [vmem:[#allocation2] sm:$0xff]
    %v263 = vld [vmem:[#allocation2 + $0x8] sm:$0xff]
    %v264 = vld [vmem:[#allocation2 + $0x10] sm:$0xff]
    %v265 = vld [vmem:[#allocation2 + $0x18] sm:$0xff]
    %v266 = vld [vmem:[#allocation2 + $0x20] sm:$0xff]
    %v267 = vld [vmem:[#allocation2 + $0x28] sm:$0xff]
    %v268 = vld [vmem:[#allocation2 + $0x30] sm:$0xff]
    %v269 = vld [vmem:[#allocation2 + $0x38] sm:$0xff]
    %v270 = vld [vmem:[#allocation2 + $0x40] sm:$0xff]
    %v271 = vld [vmem:[#allocation2 + $0x48] sm:$0xff]
    %v272 = vld [vmem:[#allocation2 + $0x50] sm:$0xff]
    %v273 = vld [vmem:[#allocation2 + $0x58] sm:$0xff]
    %v274 = vld [vmem:[#allocation2 + $0x60] sm:$0xff]
    %v275 = vld [vmem:[#allocation2 + $0x68] sm:$0xff]
    %v276 = vld [vmem:[#allocation2 + $0x70] sm:$0xff]
    %v277 = vld [vmem:[#allocation2 + $0x78] sm:$0xff]
    %v278 = vpack.c.bf16 %v262, %v262
    %v279 = vpack.c.bf16 %v263, %v263
    %v280 = vpack.c.bf16 %v264, %v264
    %v281 = vpack.c.bf16 %v265, %v265
    %v282 = vpack.c.bf16 %v266, %v266
    %v283 = vpack.c.bf16 %v267, %v267
    %v284 = vpack.c.bf16 %v268, %v268
    %v285 = vpack.c.bf16 %v269, %v269
    %v286 = vpack.c.bf16 %v270, %v270
    %v287 = vpack.c.bf16 %v271, %v271
    %v288 = vpack.c.bf16 %v272, %v272
    %v289 = vpack.c.bf16 %v273, %v273
    %v290 = vpack.c.bf16 %v274, %v274
    %v291 = vpack.c.bf16 %v275, %v275
    %v292 = vpack.c.bf16 %v276, %v276
    %v293 = vpack.c.bf16 %v277, %v277
    %294 = vst [vmem:[%s2] sm:$0xf] %v278
    %295 = vst [vmem:[%s2 + $0x4] sm:$0xf] %v279
    %296 = vst [vmem:[%s2 + $0x8] sm:$0xf] %v280
    %297 = vst [vmem:[%s2 + $0xc] sm:$0xf] %v281
    %298 = vst [vmem:[%s2 + $0x10] sm:$0xf] %v282
    %299 = vst [vmem:[%s2 + $0x14] sm:$0xf] %v283
    %300 = vst [vmem:[%s2 + $0x18] sm:$0xf] %v284
    %301 = vst [vmem:[%s2 + $0x1c] sm:$0xf] %v285
    %302 = vst [vmem:[%s2 + $0x20] sm:$0xf] %v286
    %303 = vst [vmem:[%s2 + $0x24] sm:$0xf] %v287
    %304 = vst [vmem:[%s2 + $0x28] sm:$0xf] %v288
    %305 = vst [vmem:[%s2 + $0x2c] sm:$0xf] %v289
    %306 = vst [vmem:[%s2 + $0x30] sm:$0xf] %v290
    %307 = vst [vmem:[%s2 + $0x34] sm:$0xf] %v291
    %308 = vst [vmem:[%s2 + $0x38] sm:$0xf] %v292
    %309 = vst [vmem:[%s2 + $0x3c] sm:$0xf] %v293
    %v310 = vadd.f32 %v262, %v263
    %v311 = vadd.f32 %v310, %v264
    %v312 = vadd.f32 %v311, %v265
    %v313 = vadd.f32 %v312, %v266
    %v314 = vadd.f32 %v313, %v267
    %v315 = vadd.f32 %v314, %v268
    %v316 = vadd.f32 %v315, %v269
    %v317 = vadd.f32 %v316, %v270
    %v318 = vadd.f32 %v317, %v271
    %v319 = vadd.f32 %v318, %v272
    %v320 = vadd.f32 %v319, %v273
    %v321 = vadd.f32 %v320, %v274
    %v322 = vadd.f32 %v321, %v275
    %v323 = vadd.f32 %v322, %v276
    %v324 = vadd.f32 %v323, %v277
    %v325 = vrot.slane %v324, 4
    %v326 = vadd.f32 %v324, %v325
    %v327 = vrot.slane %v326, 2
    %v328 = vadd.f32 %v326, %v327
    %v329 = vrot.slane %v328, 1
    %v330 = vadd.f32 %v328, %v329
    %331 = vst [vmem:[%s3] sm:$0x1] %v330
    %v332 = vmul.f32 %v262, %v262
    %v333 = vmul.f32 %v263, %v263
    %v334 = vmul.f32 %v264, %v264
    %v335 = vmul.f32 %v265, %v265
    %v336 = vmul.f32 %v266, %v266
    %v337 = vmul.f32 %v267, %v267
    %v338 = vmul.f32 %v268, %v268
    %v339 = vmul.f32 %v269, %v269
    %v340 = vmul.f32 %v270, %v270
    %v341 = vmul.f32 %v271, %v271
    %v342 = vmul.f32 %v272, %v272
    %v343 = vmul.f32 %v273, %v273
    %v344 = vmul.f32 %v274, %v274
    %v345 = vmul.f32 %v275, %v275
    %v346 = vmul.f32 %v276, %v276
    %v347 = vmul.f32 %v277, %v277
    %v348 = vadd.f32 %v332, %v333
    %v349 = vadd.f32 %v348, %v334
    %v350 = vadd.f32 %v349, %v335
    %v351 = vadd.f32 %v350, %v336
    %v352 = vadd.f32 %v351, %v337
    %v353 = vadd.f32 %v352, %v338
    %v354 = vadd.f32 %v353, %v339
    %v355 = vadd.f32 %v354, %v340
    %v356 = vadd.f32 %v355, %v341
    %v357 = vadd.f32 %v356, %v342
    %v358 = vadd.f32 %v357, %v343
    %v359 = vadd.f32 %v358, %v344
    %v360 = vadd.f32 %v359, %v345
    %v361 = vadd.f32 %v360, %v346
    %v362 = vadd.f32 %v361, %v347
    %v363 = vrot.slane %v362, 4
    %v364 = vadd.f32 %v362, %v363
    %v365 = vrot.slane %v364, 2
    %v366 = vadd.f32 %v364, %v365
    %v367 = vrot.slane %v366, 1
    %v368 = vadd.f32 %v366, %v367
    %369 = vst [vmem:[%s4] sm:$0x1] %v368
  $region17: #{resblock_forward.6} parent=0 // pred_fallthru
    _
  // Predicated region
  $region18: #{resblock_forward.6} parent=0 // pred_check
    _
  $region19: #{resblock_forward.6} parent=0 // pred_check_branch
    %371 = sbr.rel (0) target = $region21
  $region20: #{resblock_forward.6} parent=0 // pred_region
    _
  $region21: #{resblock_forward.6} parent=0 // pred_fallthru
    _
  // Predicated region
  $region22: #{resblock_forward.6} parent=0 // pred_check
    _
  $region23: #{resblock_forward.6} parent=0 // pred_check_branch
    %373 = sbr.rel (0) target = $region25
  $region24: #{resblock_forward.6} parent=0 // pred_region
    _
  $region25: #{resblock_forward.6} parent=0 // pred_fallthru
    _
  // Predicated region
  $region26: #{resblock_forward.6} parent=0 // pred_check
    _
  $region27: #{resblock_forward.6} parent=0 // pred_check_branch
    %375 = sbr.rel (0) target = $region29
  $region28: #{resblock_forward.6} parent=0 // pred_region
    _
  $region29: #{resblock_forward.6} parent=0 // pred_fallthru
    _
  // Predicated region
  $region30: #{resblock_forward.6} parent=0 // pred_check
    _
  $region31: #{resblock_forward.6} parent=0 // pred_check_branch
    %377 = sbr.rel (0) target = $region33
  $region32: #{resblock_forward.6} parent=0 // pred_region
    _
  $region33: #{resblock_forward.6} parent=0 // pred_fallthru
    _
  // Predicated region
  $region34: #{resblock_forward.6} parent=0 // pred_check
    _
  $region35: #{resblock_forward.6} parent=0 // pred_check_branch
    %379 = sbr.rel (0) target = $region37
  $region36: #{resblock_forward.6} parent=0 // pred_region
    _
  $region37: #{resblock_forward.6} parent=0 // pred_fallthru
    _
  // Predicated region
  $region38: #{resblock_forward.6} parent=0 // pred_check
    _
  $region39: #{resblock_forward.6} parent=0 // pred_check_branch
    %381 = sbr.rel (0) target = $region41
  $region40: #{resblock_forward.6} parent=0 // pred_region
    _
  $region41: #{resblock_forward.6} parent=0 // pred_fallthru
    _

// kernel: resblock_forward.9
$region0: #{resblock_forward.9}
  #allocation0 [shape = 'u32[]', space=smem, size = 0x4, offset = 0x4, fixed_abs, tag = 'smem constant byte address 0x4 - core index']
  #allocation1 [shape = 'u32[72,128]{1,0:T(1,128)}', space=vmem, size = 0x9000, scoped, tag = 'internal scratch']
  %s0 = inlined_call_operand.vmem [shape: bf16[128,128], index: 0, kind: input, shape index: {}]
  %s1 = inlined_call_operand.vmem [shape: f32[1,128], index: 1, kind: input, shape index: {}]
  %s2 = inlined_call_operand.vmem [shape: f32[1,128], index: 2, kind: input, shape index: {}]
  %s3 = inlined_call_operand.vmem [shape: f32[1,128], index: 3, kind: input, shape index: {}]
  %s4 = inlined_call_operand.vmem [shape: f32[1,128], index: 4, kind: input, shape index: {}]
  %s5 = inlined_call_operand.vmem [shape: bf16[128,128], index: 5, kind: input, shape index: {}]
  %s6 = inlined_call_operand.vmem [shape: f32[1,128], index: 6, kind: input, shape index: {}]
  %s7 = inlined_call_operand.vmem [shape: f32[1,128], index: 7, kind: input, shape index: {}]
  %s8 = inlined_call_operand.vmem [shape: f32[1,128], index: 8, kind: input, shape index: {}]
  %s9 = inlined_call_operand.vmem [shape: f32[1,128], index: 9, kind: input, shape index: {}]
  %s10 = inlined_call_operand.vmem [shape: f32[128,128], index: 10, kind: output, shape index: {}]
  %s11 = sld [smem:[#allocation0]]
  $region50: #{resblock_forward.9} parent=0
    _
  %s13 = ssub.s32 1, %s11
  %s14 = scalar_select 0, %s13, %s11
  // Predicated region
  $region2: #{resblock_forward.9} parent=0 // pred_check
    _
  $region3: #{resblock_forward.9} parent=0 // pred_check_branch
    %16 = sbr.rel (0) target = $region5
  $region4: #{resblock_forward.9} parent=0 // pred_region
    _
  $region5: #{resblock_forward.9} parent=0 // pred_fallthru
    _
  // Predicated region
  $region6: #{resblock_forward.9} parent=0 // pred_check
    _
  $region7: #{resblock_forward.9} parent=0 // pred_check_branch
    %18 = sbr.rel (0) target = $region9
  $region8: #{resblock_forward.9} parent=0 // pred_region
    _
  $region9: #{resblock_forward.9} parent=0 // pred_fallthru
    _
  // Predicated region
  $region10: #{resblock_forward.9} parent=0 // pred_check
    _
  $region11: #{resblock_forward.9} parent=0 // pred_check_branch
    %20 = sbr.rel (0) target = $region13
  $region12: #{resblock_forward.9} parent=0 // pred_region
    _
  $region13: #{resblock_forward.9} parent=0 // pred_fallthru
    _
  // Predicated region
  $region14: #{resblock_forward.9} parent=0 // pred_check
    _
  $region15: #{resblock_forward.9} parent=0 // pred_check_branch
    %22 = sbr.rel (0) target = $region17
  $region16: #{resblock_forward.9} parent=0 // pred_region
    _
  $region17: #{resblock_forward.9} parent=0 // pred_fallthru
    _
  // Predicated region
  $region18: #{resblock_forward.9} parent=0 // pred_check
    _
  $region19: #{resblock_forward.9} parent=0 // pred_check_branch
    %24 = sbr.rel (0) target = $region21
  $region20: #{resblock_forward.9} parent=0 // pred_region
    _
  $region21: #{resblock_forward.9} parent=0 // pred_fallthru
    _
  // Predicated region
  $region22: #{resblock_forward.9} parent=0 // pred_check
    _
  $region23: #{resblock_forward.9} parent=0 // pred_check_branch
    %26 = sbr.rel (0) target = $region25
  $region24: #{resblock_forward.9} parent=0 // pred_region
    _
  $region25: #{resblock_forward.9} parent=0 // pred_fallthru
    _
  // Predicated region
  $region26: #{resblock_forward.9} parent=0 // pred_check
    _
  $region27: #{resblock_forward.9} parent=0 // pred_check_branch
    %28 = sbr.rel (0) target = $region29
  $region28: #{resblock_forward.9} parent=0 // pred_region
    _
  $region29: #{resblock_forward.9} parent=0 // pred_fallthru
    _
  // Predicated region
  $region30: #{resblock_forward.9} parent=0 // pred_check
    _
  $region31: #{resblock_forward.9} parent=0 // pred_check_branch
    %30 = sbr.rel (0) target = $region33
  $region32: #{resblock_forward.9} parent=0 // pred_region
    _
  $region33: #{resblock_forward.9} parent=0 // pred_fallthru
    _
  // Predicated region
  $region34: #{resblock_forward.9} parent=0 // pred_check
    _
  $region35: #{resblock_forward.9} parent=0 // pred_check_branch
    %32 = sbr.rel (0) target = $region37
  $region36: #{resblock_forward.9} parent=0 // pred_region
    _
  $region37: #{resblock_forward.9} parent=0 // pred_fallthru
    _
  // Predicated region
  $region38: #{resblock_forward.9} parent=0 // pred_check
    _
  $region39: #{resblock_forward.9} parent=0 // pred_check_branch
    %34 = sbr.rel (0) target = $region41
  $region40: #{resblock_forward.9} parent=0 // pred_region
    _
  $region41: #{resblock_forward.9} parent=0 // pred_fallthru
    _
  %v35 = vld [vmem:[%s1] sm:$0x1]
  %v36 = vld [vmem:[%s2] sm:$0x1]
  %v37 = vld [vmem:[%s3] sm:$0x1]
  %v38 = vld [vmem:[%s4] sm:$0x1]
  %v39 = vmul.f32 %v35, 0.0078125
  %v40 = vmul.f32 %v36, 0.0078125
  %v41 = vmul.f32 %v39, %v39
  %v42 = vsub.f32 %v40, %v41
  %v43 = vmax.f32 %v42, 0.0
  %v44 = vadd.f32 %v43, 1e-05
  %v45 = vrsqrt.pop %v44
  %v46 = vmul.f32 %v45, %v44
  %v47 = vmul.f32 %v46, %v45
  %v48 = vmul.f32 0.5, %v47
  %v49 = vsub.f32 1.5, %v48
  %v50 = vmul.f32 %v45, %v49
  %vm51 = vweird.f32 %v44
  %vm52 = vweird.f32 %v45
  %vm53 = vmor %vm51, %vm52
  %v54 = vsel %vm53, %v45, %v50
  %v55 = vmul.f32 %v37, %v54
  %v56 = vmul.f32 %v39, %v55
  %v57 = vsub.f32 %v38, %v56
  %v58 = vld [vmem:[%s0] sm:$0xf]
  %v59 = vld [vmem:[%s0 + $0x4] sm:$0xf]
  %v60 = vld [vmem:[%s0 + $0x8] sm:$0xf]
  %v61 = vld [vmem:[%s0 + $0xc] sm:$0xf]
  %v62 = vld [vmem:[%s0 + $0x10] sm:$0xf]
  %v63 = vld [vmem:[%s0 + $0x14] sm:$0xf]
  %v64 = vld [vmem:[%s0 + $0x18] sm:$0xf]
  %v65 = vld [vmem:[%s0 + $0x1c] sm:$0xf]
  %v66 = vld [vmem:[%s0 + $0x20] sm:$0xf]
  %v67 = vld [vmem:[%s0 + $0x24] sm:$0xf]
  %v68 = vld [vmem:[%s0 + $0x28] sm:$0xf]
  %v69 = vld [vmem:[%s0 + $0x2c] sm:$0xf]
  %v70 = vld [vmem:[%s0 + $0x30] sm:$0xf]
  %v71 = vld [vmem:[%s0 + $0x34] sm:$0xf]
  %v72 = vld [vmem:[%s0 + $0x38] sm:$0xf]
  %v73 = vld [vmem:[%s0 + $0x3c] sm:$0xf]
  %v74 = vunpack.c.l.bf16 %v58
  %v75 = vunpack.c.l.bf16 %v59
  %v76 = vunpack.c.l.bf16 %v60
  %v77 = vunpack.c.l.bf16 %v61
  %v78 = vunpack.c.l.bf16 %v62
  %v79 = vunpack.c.l.bf16 %v63
  %v80 = vunpack.c.l.bf16 %v64
  %v81 = vunpack.c.l.bf16 %v65
  %v82 = vunpack.c.l.bf16 %v66
  %v83 = vunpack.c.l.bf16 %v67
  %v84 = vunpack.c.l.bf16 %v68
  %v85 = vunpack.c.l.bf16 %v69
  %v86 = vunpack.c.l.bf16 %v70
  %v87 = vunpack.c.l.bf16 %v71
  %v88 = vunpack.c.l.bf16 %v72
  %v89 = vunpack.c.l.bf16 %v73
  %v91 = vperm.slane %v55, 0
  %v93 = vmul.f32 %v74, %v91
  %v94 = vmul.f32 %v75, %v91
  %v95 = vmul.f32 %v76, %v91
  %v96 = vmul.f32 %v77, %v91
  %v97 = vmul.f32 %v78, %v91
  %v98 = vmul.f32 %v79, %v91
  %v99 = vmul.f32 %v80, %v91
  %v100 = vmul.f32 %v81, %v91
  %v101 = vmul.f32 %v82, %v91
  %v102 = vmul.f32 %v83, %v91
  %v103 = vmul.f32 %v84, %v91
  %v104 = vmul.f32 %v85, %v91
  %v105 = vmul.f32 %v86, %v91
  %v106 = vmul.f32 %v87, %v91
  %v107 = vmul.f32 %v88, %v91
  %v108 = vmul.f32 %v89, %v91
  %v110 = vperm.slane %v57, 0
  %v112 = vadd.f32 %v93, %v110
  %v113 = vadd.f32 %v94, %v110
  %v114 = vadd.f32 %v95, %v110
  %v115 = vadd.f32 %v96, %v110
  %v116 = vadd.f32 %v97, %v110
  %v117 = vadd.f32 %v98, %v110
  %v118 = vadd.f32 %v99, %v110
  %v119 = vadd.f32 %v100, %v110
  %v120 = vadd.f32 %v101, %v110
  %v121 = vadd.f32 %v102, %v110
  %v122 = vadd.f32 %v103, %v110
  %v123 = vadd.f32 %v104, %v110
  %v124 = vadd.f32 %v105, %v110
  %v125 = vadd.f32 %v106, %v110
  %v126 = vadd.f32 %v107, %v110
  %v127 = vadd.f32 %v108, %v110
  %v128 = vld [vmem:[%s6] sm:$0x1]
  %v129 = vld [vmem:[%s7] sm:$0x1]
  %v130 = vld [vmem:[%s8] sm:$0x1]
  %v131 = vld [vmem:[%s9] sm:$0x1]
  %v132 = vmul.f32 %v128, 0.0078125
  %v133 = vmul.f32 %v129, 0.0078125
  %v134 = vmul.f32 %v132, %v132
  %v135 = vsub.f32 %v133, %v134
  %v136 = vmax.f32 %v135, 0.0
  %v137 = vadd.f32 %v136, 1e-05
  %v138 = vrsqrt.pop %v137
  %v139 = vmul.f32 %v138, %v137
  %v140 = vmul.f32 %v139, %v138
  %v141 = vmul.f32 0.5, %v140
  %v142 = vsub.f32 1.5, %v141
  %v143 = vmul.f32 %v138, %v142
  %vm144 = vweird.f32 %v137
  %vm145 = vweird.f32 %v138
  %vm146 = vmor %vm144, %vm145
  %v147 = vsel %vm146, %v138, %v143
  %v148 = vmul.f32 %v130, %v147
  %v149 = vmul.f32 %v132, %v148
  %v150 = vsub.f32 %v131, %v149
  %v151 = vld [vmem:[%s5] sm:$0xf]
  %v152 = vld [vmem:[%s5 + $0x4] sm:$0xf]
  %v153 = vld [vmem:[%s5 + $0x8] sm:$0xf]
  %v154 = vld [vmem:[%s5 + $0xc] sm:$0xf]
  %v155 = vld [vmem:[%s5 + $0x10] sm:$0xf]
  %v156 = vld [vmem:[%s5 + $0x14] sm:$0xf]
  %v157 = vld [vmem:[%s5 + $0x18] sm:$0xf]
  %v158 = vld [vmem:[%s5 + $0x1c] sm:$0xf]
  %v159 = vld [vmem:[%s5 + $0x20] sm:$0xf]
  %v160 = vld [vmem:[%s5 + $0x24] sm:$0xf]
  %v161 = vld [vmem:[%s5 + $0x28] sm:$0xf]
  %v162 = vld [vmem:[%s5 + $0x2c] sm:$0xf]
  %v163 = vld [vmem:[%s5 + $0x30] sm:$0xf]
  %v164 = vld [vmem:[%s5 + $0x34] sm:$0xf]
  %v165 = vld [vmem:[%s5 + $0x38] sm:$0xf]
  %v166 = vld [vmem:[%s5 + $0x3c] sm:$0xf]
  %v167 = vunpack.c.l.bf16 %v151
  %v168 = vunpack.c.l.bf16 %v152
  %v169 = vunpack.c.l.bf16 %v153
  %v170 = vunpack.c.l.bf16 %v154
  %v171 = vunpack.c.l.bf16 %v155
  %v172 = vunpack.c.l.bf16 %v156
  %v173 = vunpack.c.l.bf16 %v157
  %v174 = vunpack.c.l.bf16 %v158
  %v175 = vunpack.c.l.bf16 %v159
  %v176 = vunpack.c.l.bf16 %v160
  %v177 = vunpack.c.l.bf16 %v161
  %v178 = vunpack.c.l.bf16 %v162
  %v179 = vunpack.c.l.bf16 %v163
  %v180 = vunpack.c.l.bf16 %v164
  %v181 = vunpack.c.l.bf16 %v165
  %v182 = vunpack.c.l.bf16 %v166
  %v184 = vperm.slane %v148, 0
  %v186 = vmul.f32 %v167, %v184
  %v187 = vmul.f32 %v168, %v184
  %v188 = vmul.f32 %v169, %v184
  %v189 = vmul.f32 %v170, %v184
  %v190 = vmul.f32 %v171, %v184
  %v191 = vmul.f32 %v172, %v184
  %v192 = vmul.f32 %v173, %v184
  %v193 = vmul.f32 %v174, %v184
  %v194 = vmul.f32 %v175, %v184
  %v195 = vmul.f32 %v176, %v184
  %v196 = vmul.f32 %v177, %v184
  %v197 = vmul.f32 %v178, %v184
  %v198 = vmul.f32 %v179, %v184
  %v199 = vmul.f32 %v180, %v184
  %v200 = vmul.f32 %v181, %v184
  %v201 = vmul.f32 %v182, %v184
  %v202 = vadd.f32 %v112, %v186
  %v203 = vadd.f32 %v113, %v187
  %v204 = vadd.f32 %v114, %v188
  %v205 = vadd.f32 %v115, %v189
  %v206 = vadd.f32 %v116, %v190
  %v207 = vadd.f32 %v117, %v191
  %v208 = vadd.f32 %v118, %v192
  %v209 = vadd.f32 %v119, %v193
  %v210 = vadd.f32 %v120, %v194
  %v211 = vadd.f32 %v121, %v195
  %v212 = vadd.f32 %v122, %v196
  %v213 = vadd.f32 %v123, %v197
  %v214 = vadd.f32 %v124, %v198
  %v215 = vadd.f32 %v125, %v199
  %v216 = vadd.f32 %v126, %v200
  %v217 = vadd.f32 %v127, %v201
  %v219 = vperm.slane %v150, 0
  %v221 = vadd.f32 %v202, %v219
  %v222 = vadd.f32 %v203, %v219
  %v223 = vadd.f32 %v204, %v219
  %v224 = vadd.f32 %v205, %v219
  %v225 = vadd.f32 %v206, %v219
  %v226 = vadd.f32 %v207, %v219
  %v227 = vadd.f32 %v208, %v219
  %v228 = vadd.f32 %v209, %v219
  %v229 = vadd.f32 %v210, %v219
  %v230 = vadd.f32 %v211, %v219
  %v231 = vadd.f32 %v212, %v219
  %v232 = vadd.f32 %v213, %v219
  %v233 = vadd.f32 %v214, %v219
  %v234 = vadd.f32 %v215, %v219
  %v235 = vadd.f32 %v216, %v219
  %v236 = vadd.f32 %v217, %v219
  %v237 = vmax.f32 %v221, 0.0
  %v238 = vmax.f32 %v222, 0.0
  %v239 = vmax.f32 %v223, 0.0
  %v240 = vmax.f32 %v224, 0.0
  %v241 = vmax.f32 %v225, 0.0
  %v242 = vmax.f32 %v226, 0.0
  %v243 = vmax.f32 %v227, 0.0
  %v244 = vmax.f32 %v228, 0.0
  %v245 = vmax.f32 %v229, 0.0
  %v246 = vmax.f32 %v230, 0.0
  %v247 = vmax.f32 %v231, 0.0
  %v248 = vmax.f32 %v232, 0.0
  %v249 = vmax.f32 %v233, 0.0
  %v250 = vmax.f32 %v234, 0.0
  %v251 = vmax.f32 %v235, 0.0
  %v252 = vmax.f32 %v236, 0.0
  %253 = vst [vmem:[%s10] sm:$0xff] %v237
  %254 = vst [vmem:[%s10 + $0x8] sm:$0xff] %v238
  %255 = vst [vmem:[%s10 + $0x10] sm:$0xff] %v239
  %256 = vst [vmem:[%s10 + $0x18] sm:$0xff] %v240
  %257 = vst [vmem:[%s10 + $0x20] sm:$0xff] %v241
  %258 = vst [vmem:[%s10 + $0x28] sm:$0xff] %v242
  %259 = vst [vmem:[%s10 + $0x30] sm:$0xff] %v243
  %260 = vst [vmem:[%s10 + $0x38] sm:$0xff] %v244
  %261 = vst [vmem:[%s10 + $0x40] sm:$0xff] %v245
  %262 = vst [vmem:[%s10 + $0x48] sm:$0xff] %v246
  %263 = vst [vmem:[%s10 + $0x50] sm:$0xff] %v247
  %264 = vst [vmem:[%s10 + $0x58] sm:$0xff] %v248
  %265 = vst [vmem:[%s10 + $0x60] sm:$0xff] %v249
  %266 = vst [vmem:[%s10 + $0x68] sm:$0xff] %v250
  %267 = vst [vmem:[%s10 + $0x70] sm:$0xff] %v251
  %268 = vst [vmem:[%s10 + $0x78] sm:$0xff] %v252
  // Predicated region
  $region42: #{resblock_forward.9} parent=0 // pred_check
    _
  $region43: #{resblock_forward.9} parent=0 // pred_check_branch
    %270 = sbr.rel (0) target = $region45
  $region44: #{resblock_forward.9} parent=0 // pred_region
    _
  $region45: #{resblock_forward.9} parent=0 // pred_fallthru
    _
  // Predicated region
  $region46: #{resblock_forward.9} parent=0 // pred_check
    _
  $region47: #{resblock_forward.9} parent=0 // pred_check_branch
    %272 = sbr.rel (0) target = $region49
  $region48: #{resblock_forward.9} parent=0 // pred_region
    _
  $region49: #{resblock_forward.9} parent=0 // pred_fallthru
    _

</llo_original>
